<compile_context>
chip_gen: v5e
topology: v5e:2x2
jax: 0.10.0
libtpu: 0.0.40
codegen_flags: <defaults>
</compile_context>

<pallas_src>
import functools

import jax
import jax.numpy as jnp
from jax.experimental import pallas as pl
from jax.experimental.pallas import tpu as pltpu

N_IN = 28 * 28       # 784
N_H1 = 500
N_H1_PAD = 512       # 500 padded up to a multiple of 128
N_H2 = 256
N_OUT = 10
N_OUT_PAD = 128      # lane-dense logits

DEFAULT_TB = 2048                 # batch tile (rows per grid step)
VMEM_LIMIT_BYTES = 48 * 1024 * 1024   # safe on v7x (64 MiB phys), plenty elsewhere


def _act(name, x):
    if name == "relu":
        return jnp.maximum(x, 0.0)
    if name == "sigmoid":
        return jax.nn.sigmoid(x)
    if name == "tanh":
        return jnp.tanh(x)
    raise ValueError(f"unsupported activation: {name}")


def mlpnet_kernel(x_ref, w1_ref, b1_ref, w2_ref, b2_ref, w3_ref, b3_ref,
                  out_ref, *, f1, f2, f3):
    # x tile arrives in f32 (no separate wrapper cast pass over the input);
    # the f32->bf16 convert here is ~100 VPU cycles per tile and hides under
    # the MXU phase.
    x = x_ref[...].astype(jnp.bfloat16)

    # fc1 + f1 : MXU in bf16, accumulate f32, elementwise in f32.
    h1 = jnp.dot(x, w1_ref[...], preferred_element_type=jnp.float32)
    h1 = _act(f1, h1 + b1_ref[...])                              # (TB, 512) f32

    # fc2 + f2
    h2 = jnp.dot(h1.astype(jnp.bfloat16), w2_ref[...],
                 preferred_element_type=jnp.float32)
    h2 = _act(f2, h2 + b2_ref[...])                              # (TB, 256) f32

    # fc3 + f3 (padded to 128 output lanes for an unmasked lane-dense store)
    h3 = jnp.dot(h2.astype(jnp.bfloat16), w3_ref[...],
                 preferred_element_type=jnp.float32)
    h3 = _act(f3, h3 + b3_ref[...])                              # (TB, 128) f32

    # Mask the padded logit columns to -inf so they do not contribute to the
    # softmax denominator (act() of the zero-padded columns is finite, so
    # zeroing would NOT be enough).
    col = jax.lax.broadcasted_iota(jnp.int32, h3.shape, 1)
    h3 = jnp.where(col < N_OUT, h3, -jnp.inf)

    # log_softmax over the last dim, in f32.
    m = jnp.max(h3, axis=-1, keepdims=True)
    shifted = h3 - m
    lse = jnp.log(jnp.sum(jnp.exp(shifted), axis=-1, keepdims=True))
    out_ref[...] = (shifted - lse).astype(out_ref.dtype)


def _round_up(n, m):
    return ((n + m - 1) // m) * m


def _batch_tiling(B, tb):
    """Choose the effective batch tile.

    Guarantees: (a) tile is a multiple of 8 (sublane), (b) the padded batch is
    a multiple of the tile, (c) when the batch is large enough but would fit a
    single tile, split into >= 2 grid steps so both v7x TensorCores get work
    under dimension_semantics=("parallel",).
    """
    B8 = _round_up(max(B, 1), 8)
    if B8 <= tb:
        if B8 >= 1024:
            tb_eff = _round_up(B8 // 2, 8)   # 2 steps for megacore sharding
        else:
            tb_eff = B8                      # tiny batch: single step is fine
    else:
        tb_eff = tb
    Bp = _round_up(B8, tb_eff)
    return Bp, tb_eff


def pack_params(params):
    """One-time parameter prep (pad + bf16 cast), hoisted out of the forward.

    Invariants the kernel relies on:
      * w1/b1 padded COLUMNS (500->512) are zero AND w2's padded ROWS are
        zero, so act(0) of the padded hidden columns (0.5 for sigmoid!)
        multiplies zero weights and never leaks into fc2's output.
      * w3/b3 padded COLUMNS (10->128) produce logits that the kernel masks
        to -inf before log_softmax.
    """
    w1 = jnp.pad(params["w1"], ((0, 0), (0, N_H1_PAD - N_H1))).astype(jnp.bfloat16)
    b1 = jnp.pad(params["b1"], ((0, 0), (0, N_H1_PAD - N_H1))).astype(jnp.float32)
    w2 = jnp.pad(params["w2"], ((0, N_H1_PAD - N_H1), (0, 0))).astype(jnp.bfloat16)
    b2 = params["b2"].astype(jnp.float32)
    w3 = jnp.pad(params["w3"], ((0, 0), (0, N_OUT_PAD - N_OUT))).astype(jnp.bfloat16)
    b3 = jnp.pad(params["b3"], ((0, 0), (0, N_OUT_PAD - N_OUT))).astype(jnp.float32)
    return {"w1": w1, "b1": b1, "w2": w2, "b2": b2, "w3": w3, "b3": b3}


def mlpnet_forward(x_nchw, packed, *, f1="relu", f2="relu", f3="relu",
                   tb=DEFAULT_TB):
    """x_nchw: (B, 1, 28, 28) float32.  `packed` from pack_params().

    Returns (B, 10) float32 log-probabilities.
    """
    B = x_nchw.shape[0]
    x = x_nchw.reshape(B, N_IN)          # stays f32; bf16 cast happens in-kernel

    Bp, tb_eff = _batch_tiling(B, tb)
    if Bp != B:
        # NOTE: materializes a copy of x in HBM.  For very large ragged
        # batches prefer picking tb to divide B (or run a small second call
        # for the tail) instead of padding.
        x = jnp.pad(x, ((0, Bp - B), (0, 0)))

    kernel = functools.partial(mlpnet_kernel, f1=f1, f2=f2, f3=f3)

    out_padded = pl.pallas_call(
        kernel,
        out_shape=jax.ShapeDtypeStruct((Bp, N_OUT_PAD), jnp.float32),
        grid_spec=pltpu.PrefetchScalarGridSpec(
            num_scalar_prefetch=0,
            grid=(Bp // tb_eff,),
            in_specs=[
                # x: streamed per batch tile (auto double-buffered).
                pl.BlockSpec((tb_eff, N_IN), lambda i: (i, 0)),
                # weights / biases: constant index_map -> VMEM-resident,
                # DMA'd once (~1.1 MB total; default buffering is fine).
                pl.BlockSpec((N_IN, N_H1_PAD), lambda i: (0, 0)),
                pl.BlockSpec((1, N_H1_PAD), lambda i: (0, 0)),
                pl.BlockSpec((N_H1_PAD, N_H2), lambda i: (0, 0)),
                pl.BlockSpec((1, N_H2), lambda i: (0, 0)),
                pl.BlockSpec((N_H2, N_OUT_PAD), lambda i: (0, 0)),
                pl.BlockSpec((1, N_OUT_PAD), lambda i: (0, 0)),
            ],
            out_specs=pl.BlockSpec((tb_eff, N_OUT_PAD), lambda i: (i, 0)),
        ),
        compiler_params=pltpu.CompilerParams(
            dimension_semantics=("parallel",),   # megacore on v7x, no-op elsewhere
            vmem_limit_bytes=VMEM_LIMIT_BYTES,
        ),
    )(x, packed["w1"], packed["b1"], packed["w2"], packed["b2"],
      packed["w3"], packed["b3"])

    # Drop batch padding and the padded logit lanes.
    return out_padded[:B, :N_OUT]


def init_params(key):
    """Torch-like nn.Linear init; weights stored as (in_features, out_features)."""
    def linear(key, fan_in, fan_out):
        kw, kb = jax.random.split(key)
        bound = 1.0 / jnp.sqrt(fan_in)
        w = jax.random.uniform(kw, (fan_in, fan_out), jnp.float32, -bound, bound)
        b = jax.random.uniform(kb, (1, fan_out), jnp.float32, -bound, bound)
        return w, b

    k1, k2, k3 = jax.random.split(key, 3)
    w1, b1 = linear(k1, N_IN, N_H1)
    w2, b2 = linear(k2, N_H1, N_H2)
    w3, b3 = linear(k3, N_H2, N_OUT)
    return {"w1": w1, "b1": b1, "w2": w2, "b2": b2, "w3": w3, "b3": b3}


def mlpnet_reference(x_nchw, params, *, f1="relu", f2="relu", f3="relu"):
    """Pure-JAX f32 reference for correctness checking."""
    x = x_nchw.reshape(x_nchw.shape[0], N_IN)
    h1 = _act(f1, x @ params["w1"] + params["b1"])
    h2 = _act(f2, h1 @ params["w2"] + params["b2"])
    h3 = _act(f3, h2 @ params["w3"] + params["b3"])
    return jax.nn.log_softmax(h3, axis=-1)


if __name__ == "__main__":
    key = jax.random.PRNGKey(0)
    kp, kx = jax.random.split(key)

    params = init_params(kp)
    packed = pack_params(params)                      # one-time weight prep
    x = jax.random.normal(kx, (2, 1, 28, 28), dtype=jnp.float32)  # MNIST-like NCHW

    # relu3 variant
    out = mlpnet_forward(x, packed, f1="relu", f2="relu", f3="relu")
    out = jax.block_until_ready(out)
    assert out.shape == (2, 10)

    # log-probs over 10 classes should exponentiate-sum to 1
    probs_sum = jnp.sum(jnp.exp(out), axis=-1)
    assert bool(jnp.all(jnp.abs(probs_sum - 1.0) < 1e-4))

    # compare against an f32 pure-JAX reference (loose tol: bf16 MXU operands)
    ref = mlpnet_reference(x, params, f1="relu", f2="relu", f3="relu")
    assert bool(jnp.max(jnp.abs(out - ref)) < 0.1)

    # sigmoid3 variant (also exercises the act(0)=0.5 padding invariant)
    out_s = mlpnet_forward(x, packed, f1="sigmoid", f2="sigmoid", f3="sigmoid")
    out_s = jax.block_until_ready(out_s)
    ref_s = mlpnet_reference(x, params, f1="sigmoid", f2="sigmoid", f3="sigmoid")
    assert bool(jnp.max(jnp.abs(out_s - ref_s)) < 0.1)

    print("KERNEL_OK")
</pallas_src>

<mosaic_0001>
module attributes {stable_mosaic.version = 11 : i64} {
  func.func @mlpnet_kernel(%arg0: i32, %arg1: memref<8x784xf32, #tpu.memory_space<vmem>>, %arg2: memref<784x512xbf16, #tpu.memory_space<vmem>>, %arg3: memref<1x512xf32, #tpu.memory_space<vmem>>, %arg4: memref<512x256xbf16, #tpu.memory_space<vmem>>, %arg5: memref<1x256xf32, #tpu.memory_space<vmem>>, %arg6: memref<256x128xbf16, #tpu.memory_space<vmem>>, %arg7: memref<1x128xf32, #tpu.memory_space<vmem>>, %arg8: memref<8x128xf32, #tpu.memory_space<vmem>>) attributes {dimension_semantics = [#tpu.dimension_semantics<parallel>], iteration_bounds = array<i64: 1>, scalar_prefetch = 0 : i64, scratch_operands = 0 : i64, tpu.core_type = #tpu.core_type<tc>, window_params = [{transform_indices = @transform_0, window_bounds = array<i64: 8, 784>}, {pipeline_mode = #tpu.pipeline_mode<synchronous>, transform_indices = @transform_1, window_bounds = array<i64: 784, 512>}, {pipeline_mode = #tpu.pipeline_mode<synchronous>, transform_indices = @transform_2, window_bounds = array<i64: 1, 512>}, {pipeline_mode = #tpu.pipeline_mode<synchronous>, transform_indices = @transform_3, window_bounds = array<i64: 512, 256>}, {pipeline_mode = #tpu.pipeline_mode<synchronous>, transform_indices = @transform_4, window_bounds = array<i64: 1, 256>}, {pipeline_mode = #tpu.pipeline_mode<synchronous>, transform_indices = @transform_5, window_bounds = array<i64: 256, 128>}, {pipeline_mode = #tpu.pipeline_mode<synchronous>, transform_indices = @transform_6, window_bounds = array<i64: 1, 128>}, {transform_indices = @transform_7, window_bounds = array<i64: 8, 128>}]} {
    %c0 = arith.constant 0 : index
    %c0_0 = arith.constant 0 : index
    %0 = vector.load %arg1[%c0, %c0_0] : memref<8x784xf32, #tpu.memory_space<vmem>>, vector<8x784xf32>
    %1 = arith.truncf %0 : vector<8x784xf32> to vector<8x784xbf16>
    %c0_1 = arith.constant 0 : index
    %c0_2 = arith.constant 0 : index
    %2 = vector.load %arg2[%c0_1, %c0_2] : memref<784x512xbf16, #tpu.memory_space<vmem>>, vector<784x512xbf16>
    %cst = arith.constant dense<0.000000e+00> : vector<8x512xf32>
    %3 = tpu.matmul %1, %2, %cst {dimension_numbers = #tpu.dot_dimension_numbers<[1], [0], [0], [1], [0, 0, 1, 1], [], []>} : vector<8x784xbf16>, vector<784x512xbf16>, vector<8x512xf32> -> vector<8x512xf32>
    %c0_3 = arith.constant 0 : index
    %c0_4 = arith.constant 0 : index
    %4 = vector.load %arg3[%c0_3, %c0_4] : memref<1x512xf32, #tpu.memory_space<vmem>>, vector<1x512xf32>
    %5 = vector.broadcast %4 : vector<1x512xf32> to vector<8x512xf32>
    %6 = arith.addf %3, %5 : vector<8x512xf32>
    %cst_5 = arith.constant 0.000000e+00 : f32
    %7 = vector.broadcast %cst_5 : f32 to vector<8x512xf32>
    %8 = arith.maximumf %6, %7 : vector<8x512xf32>
    %9 = arith.truncf %8 : vector<8x512xf32> to vector<8x512xbf16>
    %c0_6 = arith.constant 0 : index
    %c0_7 = arith.constant 0 : index
    %10 = vector.load %arg4[%c0_6, %c0_7] : memref<512x256xbf16, #tpu.memory_space<vmem>>, vector<512x256xbf16>
    %cst_8 = arith.constant dense<0.000000e+00> : vector<8x256xf32>
    %11 = tpu.matmul %9, %10, %cst_8 {dimension_numbers = #tpu.dot_dimension_numbers<[1], [0], [0], [1], [0, 0, 1, 1], [], []>} : vector<8x512xbf16>, vector<512x256xbf16>, vector<8x256xf32> -> vector<8x256xf32>
    %c0_9 = arith.constant 0 : index
    %c0_10 = arith.constant 0 : index
    %12 = vector.load %arg5[%c0_9, %c0_10] : memref<1x256xf32, #tpu.memory_space<vmem>>, vector<1x256xf32>
    %13 = vector.broadcast %12 : vector<1x256xf32> to vector<8x256xf32>
    %14 = arith.addf %11, %13 : vector<8x256xf32>
    %cst_11 = arith.constant 0.000000e+00 : f32
    %15 = vector.broadcast %cst_11 : f32 to vector<8x256xf32>
    %16 = arith.maximumf %14, %15 : vector<8x256xf32>
    %17 = arith.truncf %16 : vector<8x256xf32> to vector<8x256xbf16>
    %c0_12 = arith.constant 0 : index
    %c0_13 = arith.constant 0 : index
    %18 = vector.load %arg6[%c0_12, %c0_13] : memref<256x128xbf16, #tpu.memory_space<vmem>>, vector<256x128xbf16>
    %cst_14 = arith.constant dense<0.000000e+00> : vector<8x128xf32>
    %19 = tpu.matmul %17, %18, %cst_14 {dimension_numbers = #tpu.dot_dimension_numbers<[1], [0], [0], [1], [0, 0, 1, 1], [], []>} : vector<8x256xbf16>, vector<256x128xbf16>, vector<8x128xf32> -> vector<8x128xf32>
    %c0_15 = arith.constant 0 : index
    %c0_16 = arith.constant 0 : index
    %20 = vector.load %arg7[%c0_15, %c0_16] : memref<1x128xf32, #tpu.memory_space<vmem>>, vector<1x128xf32>
    %21 = vector.broadcast %20 : vector<1x128xf32> to vector<8x128xf32>
    %22 = arith.addf %19, %21 : vector<8x128xf32>
    %cst_17 = arith.constant 0.000000e+00 : f32
    %23 = vector.broadcast %cst_17 : f32 to vector<8x128xf32>
    %24 = arith.maximumf %22, %23 : vector<8x128xf32>
    %25 = tpu.iota {dimensions = array<i32: 1>} : vector<8x128xi32>
    %c10_i32 = arith.constant 10 : i32
    %26 = vector.broadcast %c10_i32 : i32 to vector<8x128xi32>
    %27 = arith.cmpi slt, %25, %26 : vector<8x128xi32>
    %cst_18 = arith.constant 0xFF800000 : f32
    %28 = vector.broadcast %cst_18 : f32 to vector<8x128xf32>
    %29 = arith.select %27, %24, %28 : vector<8x128xi1>, vector<8x128xf32>
    %cst_19 = arith.constant dense<0xFF800000> : vector<8xf32>
    %30 = vector.multi_reduction <maximumf>, %29, %cst_19 [1] : vector<8x128xf32> to vector<8xf32>
    %31 = vector.shape_cast %30 : vector<8xf32> to vector<8x1xf32>
    %32 = vector.broadcast %31 : vector<8x1xf32> to vector<8x128xf32>
    %33 = arith.subf %29, %32 : vector<8x128xf32>
    %34 = math.exp %33 : vector<8x128xf32>
    %cst_20 = arith.constant dense<0.000000e+00> : vector<8xf32>
    %35 = vector.multi_reduction <add>, %34, %cst_20 [1] : vector<8x128xf32> to vector<8xf32>
    %36 = vector.shape_cast %35 : vector<8xf32> to vector<8x1xf32>
    %37 = math.log %36 : vector<8x1xf32>
    %38 = vector.broadcast %37 : vector<8x1xf32> to vector<8x128xf32>
    %39 = arith.subf %33, %38 : vector<8x128xf32>
    %c0_21 = arith.constant 0 : index
    %c0_22 = arith.constant 0 : index
    %40 = vector.load %arg8[%c0_21, %c0_22] : memref<8x128xf32, #tpu.memory_space<vmem>>, vector<8x128xf32>
    tpu.vector_store %arg8[%c0_21, %c0_22], %39 {strides = array<i32>} : memref<8x128xf32, #tpu.memory_space<vmem>>, vector<8x128xf32>,
    return
  }
  func.func @transform_0(%arg0: i32) -> (i32, i32) {
    %c0_i32 = arith.constant 0 : i32
    %c0_i32_0 = arith.constant 0 : i32
    return %arg0, %c0_i32 : i32, i32
  }
  func.func @transform_1(%arg0: i32) -> (i32, i32) {
    %c0_i32 = arith.constant 0 : i32
    %c0_i32_0 = arith.constant 0 : i32
    %c0_i32_1 = arith.constant 0 : i32
    return %c0_i32, %c0_i32_0 : i32, i32
  }
  func.func @transform_2(%arg0: i32) -> (i32, i32) {
    %c0_i32 = arith.constant 0 : i32
    %c0_i32_0 = arith.constant 0 : i32
    %c0_i32_1 = arith.constant 0 : i32
    return %c0_i32, %c0_i32_0 : i32, i32
  }
  func.func @transform_3(%arg0: i32) -> (i32, i32) {
    %c0_i32 = arith.constant 0 : i32
    %c0_i32_0 = arith.constant 0 : i32
    %c0_i32_1 = arith.constant 0 : i32
    return %c0_i32, %c0_i32_0 : i32, i32
  }
  func.func @transform_4(%arg0: i32) -> (i32, i32) {
    %c0_i32 = arith.constant 0 : i32
    %c0_i32_0 = arith.constant 0 : i32
    %c0_i32_1 = arith.constant 0 : i32
    return %c0_i32, %c0_i32_0 : i32, i32
  }
  func.func @transform_5(%arg0: i32) -> (i32, i32) {
    %c0_i32 = arith.constant 0 : i32
    %c0_i32_0 = arith.constant 0 : i32
    %c0_i32_1 = arith.constant 0 : i32
    return %c0_i32, %c0_i32_0 : i32, i32
  }
  func.func @transform_6(%arg0: i32) -> (i32, i32) {
    %c0_i32 = arith.constant 0 : i32
    %c0_i32_0 = arith.constant 0 : i32
    %c0_i32_1 = arith.constant 0 : i32
    return %c0_i32, %c0_i32_0 : i32, i32
  }
  func.func @transform_7(%arg0: i32) -> (i32, i32) {
    %c0_i32 = arith.constant 0 : i32
    %c0_i32_0 = arith.constant 0 : i32
    return %arg0, %c0_i32 : i32, i32
  }
}

</mosaic_0001>

<llo_original>
// kernel: tpu_custom_call.1
$region0: #{tpu_custom_call.1}
  #allocation0 [shape = 'u32[]', space=smem, size = 0x4, offset = 0x4, fixed_abs, tag = 'smem constant byte address 0x4 - core index']
  #allocation1 [shape = 'u32[72,128]{1,0:T(1,128)}', space=vmem, size = 0x9000, scoped, tag = 'internal scratch']
  %s0 = inlined_call_operand.hbm [shape: f32[8,784], index: 0, kind: input, shape index: {}]
  %s1 = inlined_call_operand.hbm [shape: bf16[784,512], index: 1, kind: input, shape index: {}]
  %s2 = inlined_call_operand.hbm [shape: f32[1,512], index: 2, kind: input, shape index: {}]
  %s3 = inlined_call_operand.hbm [shape: bf16[512,256], index: 3, kind: input, shape index: {}]
  %s4 = inlined_call_operand.vmem [shape: f32[1,256], index: 4, kind: input, shape index: {}]
  %s5 = inlined_call_operand.hbm [shape: bf16[256,128], index: 5, kind: input, shape index: {}]
  %s6 = inlined_call_operand.vmem [shape: f32[1,128], index: 6, kind: input, shape index: {}]
  %s7 = inlined_call_operand.hbm [shape: f32[8,128], index: 7, kind: output, shape index: {}]
  %s8 = sld [smem:[#allocation0]]
  $region58: #{tpu_custom_call.1} parent=0
    _
  %s10 = ssub.s32 1, %s8
  %s11 = scalar_select 0, %s10, %s8
  $region1: #{tpu_custom_call.1} parent=0
    #allocation2 [shape = 'u8[28672]{0}', space=vmem, size = 0x7000, scoped, tag = 'input window, operand 0, single buffered']
    #allocation3 [shape = 's32[1]{0}', space=sflag, size = 0x4, scoped, tag = 'scoped memory for tpu_custom_call.1']
    #allocation4 [shape = 's32[1]{0}', space=sflag, size = 0x4, scoped, tag = 'scoped memory for tpu_custom_call.1']
    #allocation5 [shape = 'u8[802816]{0}', space=vmem, size = 0xc4000, scoped, tag = 'input window, operand 1, single buffered']
    #allocation6 [shape = 's32[1]{0}', space=sflag, size = 0x4, scoped, tag = 'scoped memory for tpu_custom_call.1']
    #allocation7 [shape = 'u8[2048]{0}', space=vmem, size = 0x800, scoped, tag = 'input window, operand 2, single buffered']
    #allocation8 [shape = 'u8[262144]{0}', space=vmem, size = 0x40000, scoped, tag = 'input window, operand 3, single buffered']
    #allocation9 [shape = 's32[1]{0}', space=sflag, size = 0x4, scoped, tag = 'scoped memory for tpu_custom_call.1']
    #allocation10 [shape = 'u8[65536]{0}', space=vmem, size = 0x10000, scoped, tag = 'input window, operand 5, single buffered']
    #allocation11 [shape = 'u8[4096]{0}', space=vmem, size = 0x1000, scoped, tag = 'output window, operand 0, single buffered']
    %12 = vsyncpa [#allocation3], 0
    %13 = vsyncpa [#allocation6], 0
    %14 = vsyncpa [#allocation9], 0
    %15 = vsyncpa [#allocation4], 0
    // Predicated region
    $region2: #{tpu_custom_call.1} parent=1 // pred_check
      _
    $region3: #{tpu_custom_call.1} parent=1 // pred_check_branch
      %17 = sbr.rel (0) target = $region5
    $region4: #{tpu_custom_call.1} parent=1 // pred_region
      %19 = vsyncadd [#allocation3], 0
      %s21 = sshll.u32 %s0, 4
      %s22 = int_to_ptr.hbm [resolvable:$true] %s21
      %s23 = sshll.u32 [#allocation2], 4
      %s24 = int_to_ptr.vmem [resolvable:$true] %s23
      %26 = dma.hbm_to_vmem [thread:$0]  %s22, 896, %s24, [#allocation3]
    $region5: #{tpu_custom_call.1} parent=1 // pred_fallthru
      _
    // Predicated region
    $region6: #{tpu_custom_call.1} parent=1 // pred_check
      _
    $region7: #{tpu_custom_call.1} parent=1 // pred_check_branch
      %28 = sbr.rel (0) target = $region9
    $region8: #{tpu_custom_call.1} parent=1 // pred_region
      %30 = vsyncadd [#allocation6], 0
      %s31 = sshll.u32 %s1, 4
      %s32 = int_to_ptr.hbm [resolvable:$true] %s31
      %s33 = sshll.u32 [#allocation5], 4
      %s34 = int_to_ptr.vmem [resolvable:$true] %s33
      %39 = dma.hbm_to_vmem [thread:$0]  %s32, 25088, %s34, [#allocation6], 256, 256, 16
    $region9: #{tpu_custom_call.1} parent=1 // pred_fallthru
      _
    // Predicated region
    $region10: #{tpu_custom_call.1} parent=1 // pred_check
      _
    $region11: #{tpu_custom_call.1} parent=1 // pred_check_branch
      %41 = sbr.rel (0) target = $region13
    $region12: #{tpu_custom_call.1} parent=1 // pred_region
      %43 = vsyncadd [#allocation6], 0
      %s45 = sshll.u32 %s2, 4
      %s46 = int_to_ptr.hbm [resolvable:$true] %s45
      %s47 = sshll.u32 [#allocation7], 4
      %s48 = int_to_ptr.vmem [resolvable:$true] %s47
      %50 = dma.hbm_to_vmem [thread:$0]  %s46, 64, %s48, [#allocation6]
    $region13: #{tpu_custom_call.1} parent=1 // pred_fallthru
      _
    // Predicated region
    $region14: #{tpu_custom_call.1} parent=1 // pred_check
      _
    $region15: #{tpu_custom_call.1} parent=1 // pred_check_branch
      %52 = sbr.rel (0) target = $region17
    $region16: #{tpu_custom_call.1} parent=1 // pred_region
      %54 = vsyncadd [#allocation9], 0
      %s55 = sshll.u32 %s3, 4
      %s56 = int_to_ptr.hbm [resolvable:$true] %s55
      %s57 = sshll.u32 [#allocation8], 4
      %s58 = int_to_ptr.vmem [resolvable:$true] %s57
      %63 = dma.hbm_to_vmem [thread:$0]  %s56, 8192, %s58, [#allocation9], 128, 128, 8
    $region17: #{tpu_custom_call.1} parent=1 // pred_fallthru
      _
    // Predicated region
    $region18: #{tpu_custom_call.1} parent=1 // pred_check
      _
    $region19: #{tpu_custom_call.1} parent=1 // pred_check_branch
      %65 = sbr.rel (0) target = $region21
    $region20: #{tpu_custom_call.1} parent=1 // pred_region
      _
    $region21: #{tpu_custom_call.1} parent=1 // pred_fallthru
      _
    // Predicated region
    $region22: #{tpu_custom_call.1} parent=1 // pred_check
      _
    $region23: #{tpu_custom_call.1} parent=1 // pred_check_branch
      %67 = sbr.rel (0) target = $region25
    $region24: #{tpu_custom_call.1} parent=1 // pred_region
      %69 = vsyncadd [#allocation9], 0
      %s70 = sshll.u32 %s5, 4
      %s71 = int_to_ptr.hbm [resolvable:$true] %s70
      %s72 = sshll.u32 [#allocation10], 4
      %s73 = int_to_ptr.vmem [resolvable:$true] %s72
      %78 = dma.hbm_to_vmem [thread:$0]  %s71, 2048, %s73, [#allocation9], 64, 64, 4
    $region25: #{tpu_custom_call.1} parent=1 // pred_fallthru
      _
    // Predicated region
    $region26: #{tpu_custom_call.1} parent=1 // pred_check
      _
    $region27: #{tpu_custom_call.1} parent=1 // pred_check_branch
      %80 = sbr.rel (0) target = $region29
    $region28: #{tpu_custom_call.1} parent=1 // pred_region
      _
    $region29: #{tpu_custom_call.1} parent=1 // pred_fallthru
      _
    // Predicated region
    $region30: #{tpu_custom_call.1} parent=1 // pred_check
      _
    $region31: #{tpu_custom_call.1} parent=1 // pred_check_branch
      %82 = sbr.rel (0) target = $region33
    $region32: #{tpu_custom_call.1} parent=1 // pred_region
      %84 = dma.done [#allocation3], 896
    $region33: #{tpu_custom_call.1} parent=1 // pred_fallthru
      _
    // Predicated region
    $region34: #{tpu_custom_call.1} parent=1 // pred_check
      _
    $region35: #{tpu_custom_call.1} parent=1 // pred_check_branch
      %86 = sbr.rel (0) target = $region37
    $region36: #{tpu_custom_call.1} parent=1 // pred_region
      %88 = dma.done [#allocation6], 25088
    $region37: #{tpu_custom_call.1} parent=1 // pred_fallthru
      _
    // Predicated region
    $region38: #{tpu_custom_call.1} parent=1 // pred_check
      _
    $region39: #{tpu_custom_call.1} parent=1 // pred_check_branch
      %90 = sbr.rel (0) target = $region41
    $region40: #{tpu_custom_call.1} parent=1 // pred_region
      %92 = dma.done [#allocation6], 64
    $region41: #{tpu_custom_call.1} parent=1 // pred_fallthru
      _
    // Predicated region
    $region42: #{tpu_custom_call.1} parent=1 // pred_check
      _
    $region43: #{tpu_custom_call.1} parent=1 // pred_check_branch
      %94 = sbr.rel (0) target = $region45
    $region44: #{tpu_custom_call.1} parent=1 // pred_region
      %96 = dma.done [#allocation9], 8192
    $region45: #{tpu_custom_call.1} parent=1 // pred_fallthru
      _
    // Predicated region
    $region46: #{tpu_custom_call.1} parent=1 // pred_check
      _
    $region47: #{tpu_custom_call.1} parent=1 // pred_check_branch
      %98 = sbr.rel (0) target = $region49
    $region48: #{tpu_custom_call.1} parent=1 // pred_region
      %100 = dma.done [#allocation9], 2048
    $region49: #{tpu_custom_call.1} parent=1 // pred_fallthru
      _
    %v102 = vld [vmem:[#allocation2] sm:$0xff]
    %v103 = vld [vmem:[#allocation2 + $0x8] sm:$0xff]
    %v104 = vld [vmem:[#allocation2 + $0x10] sm:$0xff]
    %v105 = vld [vmem:[#allocation2 + $0x18] sm:$0xff]
    %v106 = vld [vmem:[#allocation2 + $0x20] sm:$0xff]
    %v107 = vld [vmem:[#allocation2 + $0x28] sm:$0xff]
    %v108 = vld [vmem:[#allocation2 + $0x30] sm:$0xff]
    %v109 = vpack.c.bf16 %v102, %v102
    %v110 = vpack.c.bf16 %v103, %v103
    %v111 = vpack.c.bf16 %v104, %v104
    %v112 = vpack.c.bf16 %v105, %v105
    %v113 = vpack.c.bf16 %v106, %v106
    %v114 = vpack.c.bf16 %v107, %v107
    %v115 = vpack.c.bf16 %v108, %v108
    %v116 = vld [vmem:[#allocation5] sm:$0xff]
    %v117 = vld [vmem:[#allocation5 + $0x8] sm:$0xff]
    %v118 = vld [vmem:[#allocation5 + $0x10] sm:$0xff]
    %v119 = vld [vmem:[#allocation5 + $0x18] sm:$0xff]
    %v120 = vld [vmem:[#allocation5 + $0x20] sm:$0xff]
    %v121 = vld [vmem:[#allocation5 + $0x28] sm:$0xff]
    %v122 = vld [vmem:[#allocation5 + $0x30] sm:$0xff]
    %v123 = vld [vmem:[#allocation5 + $0x38] sm:$0xff]
    %v124 = vld [vmem:[#allocation5 + $0x40] sm:$0xff]
    %v125 = vld [vmem:[#allocation5 + $0x48] sm:$0xff]
    %v126 = vld [vmem:[#allocation5 + $0x50] sm:$0xff]
    %v127 = vld [vmem:[#allocation5 + $0x58] sm:$0xff]
    %v128 = vld [vmem:[#allocation5 + $0x60] sm:$0xff]
    %v129 = vld [vmem:[#allocation5 + $0x68] sm:$0xff]
    %v130 = vld [vmem:[#allocation5 + $0x70] sm:$0xff]
    %v131 = vld [vmem:[#allocation5 + $0x78] sm:$0xff]
    %v132 = vld [vmem:[#allocation5 + $0x80] sm:$0xff]
    %v133 = vld [vmem:[#allocation5 + $0x88] sm:$0xff]
    %v134 = vld [vmem:[#allocation5 + $0x90] sm:$0xff]
    %v135 = vld [vmem:[#allocation5 + $0x98] sm:$0xff]
    %v136 = vld [vmem:[#allocation5 + $0xa0] sm:$0xff]
    %v137 = vld [vmem:[#allocation5 + $0xa8] sm:$0xff]
    %v138 = vld [vmem:[#allocation5 + $0xb0] sm:$0xff]
    %v139 = vld [vmem:[#allocation5 + $0xb8] sm:$0xff]
    %v140 = vld [vmem:[#allocation5 + $0xc0] sm:$0xff]
    %v141 = vld [vmem:[#allocation5 + $0xc8] sm:$0xff]
    %v142 = vld [vmem:[#allocation5 + $0xd0] sm:$0xff]
    %v143 = vld [vmem:[#allocation5 + $0xd8] sm:$0xff]
    %v144 = vld [vmem:[#allocation5 + $0xe0] sm:$0xff]
    %v145 = vld [vmem:[#allocation5 + $0xe8] sm:$0xff]
    %v146 = vld [vmem:[#allocation5 + $0xf0] sm:$0xff]
    %v147 = vld [vmem:[#allocation5 + $0xf8] sm:$0xff]
    %v148 = vld [vmem:[#allocation5 + $0x100] sm:$0xff]
    %v149 = vld [vmem:[#allocation5 + $0x108] sm:$0xff]
    %v150 = vld [vmem:[#allocation5 + $0x110] sm:$0xff]
    %v151 = vld [vmem:[#allocation5 + $0x118] sm:$0xff]
    %v152 = vld [vmem:[#allocation5 + $0x120] sm:$0xff]
    %v153 = vld [vmem:[#allocation5 + $0x128] sm:$0xff]
    %v154 = vld [vmem:[#allocation5 + $0x130] sm:$0xff]
    %v155 = vld [vmem:[#allocation5 + $0x138] sm:$0xff]
    %v156 = vld [vmem:[#allocation5 + $0x140] sm:$0xff]
    %v157 = vld [vmem:[#allocation5 + $0x148] sm:$0xff]
    %v158 = vld [vmem:[#allocation5 + $0x150] sm:$0xff]
    %v159 = vld [vmem:[#allocation5 + $0x158] sm:$0xff]
    %v160 = vld [vmem:[#allocation5 + $0x160] sm:$0xff]
    %v161 = vld [vmem:[#allocation5 + $0x168] sm:$0xff]
    %v162 = vld [vmem:[#allocation5 + $0x170] sm:$0xff]
    %v163 = vld [vmem:[#allocation5 + $0x178] sm:$0xff]
    %v164 = vld [vmem:[#allocation5 + $0x180] sm:$0xff]
    %v165 = vld [vmem:[#allocation5 + $0x188] sm:$0xff]
    %v166 = vld [vmem:[#allocation5 + $0x190] sm:$0xff]
    %v167 = vld [vmem:[#allocation5 + $0x198] sm:$0xff]
    %v168 = vld [vmem:[#allocation5 + $0x1a0] sm:$0xff]
    %v169 = vld [vmem:[#allocation5 + $0x1a8] sm:$0xff]
    %v170 = vld [vmem:[#allocation5 + $0x1b0] sm:$0xff]
    %v171 = vld [vmem:[#allocation5 + $0x1b8] sm:$0xff]
    %v172 = vld [vmem:[#allocation5 + $0x1c0] sm:$0xff]
    %v173 = vld [vmem:[#allocation5 + $0x1c8] sm:$0xff]
    %v174 = vld [vmem:[#allocation5 + $0x1d0] sm:$0xff]
    %v175 = vld [vmem:[#allocation5 + $0x1d8] sm:$0xff]
    %v176 = vld [vmem:[#allocation5 + $0x1e0] sm:$0xff]
    %v177 = vld [vmem:[#allocation5 + $0x1e8] sm:$0xff]
    %v178 = vld [vmem:[#allocation5 + $0x1f0] sm:$0xff]
    %v179 = vld [vmem:[#allocation5 + $0x1f8] sm:$0xff]
    %v180 = vld [vmem:[#allocation5 + $0x200] sm:$0xff]
    %v181 = vld [vmem:[#allocation5 + $0x208] sm:$0xff]
    %v182 = vld [vmem:[#allocation5 + $0x210] sm:$0xff]
    %v183 = vld [vmem:[#allocation5 + $0x218] sm:$0xff]
    %v184 = vld [vmem:[#allocation5 + $0x220] sm:$0xff]
    %v185 = vld [vmem:[#allocation5 + $0x228] sm:$0xff]
    %v186 = vld [vmem:[#allocation5 + $0x230] sm:$0xff]
    %v187 = vld [vmem:[#allocation5 + $0x238] sm:$0xff]
    %v188 = vld [vmem:[#allocation5 + $0x240] sm:$0xff]
    %v189 = vld [vmem:[#allocation5 + $0x248] sm:$0xff]
    %v190 = vld [vmem:[#allocation5 + $0x250] sm:$0xff]
    %v191 = vld [vmem:[#allocation5 + $0x258] sm:$0xff]
    %v192 = vld [vmem:[#allocation5 + $0x260] sm:$0xff]
    %v193 = vld [vmem:[#allocation5 + $0x268] sm:$0xff]
    %v194 = vld [vmem:[#allocation5 + $0x270] sm:$0xff]
    %v195 = vld [vmem:[#allocation5 + $0x278] sm:$0xff]
    %v196 = vld [vmem:[#allocation5 + $0x280] sm:$0xff]
    %v197 = vld [vmem:[#allocation5 + $0x288] sm:$0xff]
    %v198 = vld [vmem:[#allocation5 + $0x290] sm:$0xff]
    %v199 = vld [vmem:[#allocation5 + $0x298] sm:$0xff]
    %v200 = vld [vmem:[#allocation5 + $0x2a0] sm:$0xff]
    %v201 = vld [vmem:[#allocation5 + $0x2a8] sm:$0xff]
    %v202 = vld [vmem:[#allocation5 + $0x2b0] sm:$0xff]
    %v203 = vld [vmem:[#allocation5 + $0x2b8] sm:$0xff]
    %v204 = vld [vmem:[#allocation5 + $0x2c0] sm:$0xff]
    %v205 = vld [vmem:[#allocation5 + $0x2c8] sm:$0xff]
    %v206 = vld [vmem:[#allocation5 + $0x2d0] sm:$0xff]
    %v207 = vld [vmem:[#allocation5 + $0x2d8] sm:$0xff]
    %v208 = vld [vmem:[#allocation5 + $0x2e0] sm:$0xff]
    %v209 = vld [vmem:[#allocation5 + $0x2e8] sm:$0xff]
    %v210 = vld [vmem:[#allocation5 + $0x2f0] sm:$0xff]
    %v211 = vld [vmem:[#allocation5 + $0x2f8] sm:$0xff]
    %v212 = vld [vmem:[#allocation5 + $0x300] sm:$0xff]
    %v213 = vld [vmem:[#allocation5 + $0x308] sm:$0xff]
    %v214 = vld [vmem:[#allocation5 + $0x310] sm:$0xff]
    %v215 = vld [vmem:[#allocation5 + $0x318] sm:$0xff]
    %v216 = vld [vmem:[#allocation5 + $0x320] sm:$0xff]
    %v217 = vld [vmem:[#allocation5 + $0x328] sm:$0xff]
    %v218 = vld [vmem:[#allocation5 + $0x330] sm:$0xff]
    %v219 = vld [vmem:[#allocation5 + $0x338] sm:$0xff]
    %v220 = vld [vmem:[#allocation5 + $0x340] sm:$0xff]
    %v221 = vld [vmem:[#allocation5 + $0x348] sm:$0xff]
    %v222 = vld [vmem:[#allocation5 + $0x350] sm:$0xff]
    %v223 = vld [vmem:[#allocation5 + $0x358] sm:$0xff]
    %v224 = vld [vmem:[#allocation5 + $0x360] sm:$0xff]
    %v225 = vld [vmem:[#allocation5 + $0x368] sm:$0xff]
    %v226 = vld [vmem:[#allocation5 + $0x370] sm:$0xff]
    %v227 = vld [vmem:[#allocation5 + $0x378] sm:$0xff]
    %v228 = vld [vmem:[#allocation5 + $0x380] sm:$0xff]
    %v229 = vld [vmem:[#allocation5 + $0x388] sm:$0xff]
    %v230 = vld [vmem:[#allocation5 + $0x390] sm:$0xff]
    %v231 = vld [vmem:[#allocation5 + $0x398] sm:$0xff]
    %v232 = vld [vmem:[#allocation5 + $0x3a0] sm:$0xff]
    %v233 = vld [vmem:[#allocation5 + $0x3a8] sm:$0xff]
    %v234 = vld [vmem:[#allocation5 + $0x3b0] sm:$0xff]
    %v235 = vld [vmem:[#allocation5 + $0x3b8] sm:$0xff]
    %v236 = vld [vmem:[#allocation5 + $0x3c0] sm:$0xff]
    %v237 = vld [vmem:[#allocation5 + $0x3c8] sm:$0xff]
    %v238 = vld [vmem:[#allocation5 + $0x3d0] sm:$0xff]
    %v239 = vld [vmem:[#allocation5 + $0x3d8] sm:$0xff]
    %v240 = vld [vmem:[#allocation5 + $0x3e0] sm:$0xff]
    %v241 = vld [vmem:[#allocation5 + $0x3e8] sm:$0xff]
    %v242 = vld [vmem:[#allocation5 + $0x3f0] sm:$0xff]
    %v243 = vld [vmem:[#allocation5 + $0x3f8] sm:$0xff]
    %v244 = vld [vmem:[#allocation5 + $0x400] sm:$0xff]
    %v245 = vld [vmem:[#allocation5 + $0x408] sm:$0xff]
    %v246 = vld [vmem:[#allocation5 + $0x410] sm:$0xff]
    %v247 = vld [vmem:[#allocation5 + $0x418] sm:$0xff]
    %v248 = vld [vmem:[#allocation5 + $0x420] sm:$0xff]
    %v249 = vld [vmem:[#allocation5 + $0x428] sm:$0xff]
    %v250 = vld [vmem:[#allocation5 + $0x430] sm:$0xff]
    %v251 = vld [vmem:[#allocation5 + $0x438] sm:$0xff]
    %v252 = vld [vmem:[#allocation5 + $0x440] sm:$0xff]
    %v253 = vld [vmem:[#allocation5 + $0x448] sm:$0xff]
    %v254 = vld [vmem:[#allocation5 + $0x450] sm:$0xff]
    %v255 = vld [vmem:[#allocation5 + $0x458] sm:$0xff]
    %v256 = vld [vmem:[#allocation5 + $0x460] sm:$0xff]
    %v257 = vld [vmem:[#allocation5 + $0x468] sm:$0xff]
    %v258 = vld [vmem:[#allocation5 + $0x470] sm:$0xff]
    %v259 = vld [vmem:[#allocation5 + $0x478] sm:$0xff]
    %v260 = vld [vmem:[#allocation5 + $0x480] sm:$0xff]
    %v261 = vld [vmem:[#allocation5 + $0x488] sm:$0xff]
    %v262 = vld [vmem:[#allocation5 + $0x490] sm:$0xff]
    %v263 = vld [vmem:[#allocation5 + $0x498] sm:$0xff]
    %v264 = vld [vmem:[#allocation5 + $0x4a0] sm:$0xff]
    %v265 = vld [vmem:[#allocation5 + $0x4a8] sm:$0xff]
    %v266 = vld [vmem:[#allocation5 + $0x4b0] sm:$0xff]
    %v267 = vld [vmem:[#allocation5 + $0x4b8] sm:$0xff]
    %v268 = vld [vmem:[#allocation5 + $0x4c0] sm:$0xff]
    %v269 = vld [vmem:[#allocation5 + $0x4c8] sm:$0xff]
    %v270 = vld [vmem:[#allocation5 + $0x4d0] sm:$0xff]
    %v271 = vld [vmem:[#allocation5 + $0x4d8] sm:$0xff]
    %v272 = vld [vmem:[#allocation5 + $0x4e0] sm:$0xff]
    %v273 = vld [vmem:[#allocation5 + $0x4e8] sm:$0xff]
    %v274 = vld [vmem:[#allocation5 + $0x4f0] sm:$0xff]
    %v275 = vld [vmem:[#allocation5 + $0x4f8] sm:$0xff]
    %v276 = vld [vmem:[#allocation5 + $0x500] sm:$0xff]
    %v277 = vld [vmem:[#allocation5 + $0x508] sm:$0xff]
    %v278 = vld [vmem:[#allocation5 + $0x510] sm:$0xff]
    %v279 = vld [vmem:[#allocation5 + $0x518] sm:$0xff]
    %v280 = vld [vmem:[#allocation5 + $0x520] sm:$0xff]
    %v281 = vld [vmem:[#allocation5 + $0x528] sm:$0xff]
    %v282 = vld [vmem:[#allocation5 + $0x530] sm:$0xff]
    %v283 = vld [vmem:[#allocation5 + $0x538] sm:$0xff]
    %v284 = vld [vmem:[#allocation5 + $0x540] sm:$0xff]
    %v285 = vld [vmem:[#allocation5 + $0x548] sm:$0xff]
    %v286 = vld [vmem:[#allocation5 + $0x550] sm:$0xff]
    %v287 = vld [vmem:[#allocation5 + $0x558] sm:$0xff]
    %v288 = vld [vmem:[#allocation5 + $0x560] sm:$0xff]
    %v289 = vld [vmem:[#allocation5 + $0x568] sm:$0xff]
    %v290 = vld [vmem:[#allocation5 + $0x570] sm:$0xff]
    %v291 = vld [vmem:[#allocation5 + $0x578] sm:$0xff]
    %v292 = vld [vmem:[#allocation5 + $0x580] sm:$0xff]
    %v293 = vld [vmem:[#allocation5 + $0x588] sm:$0xff]
    %v294 = vld [vmem:[#allocation5 + $0x590] sm:$0xff]
    %v295 = vld [vmem:[#allocation5 + $0x598] sm:$0xff]
    %v296 = vld [vmem:[#allocation5 + $0x5a0] sm:$0xff]
    %v297 = vld [vmem:[#allocation5 + $0x5a8] sm:$0xff]
    %v298 = vld [vmem:[#allocation5 + $0x5b0] sm:$0xff]
    %v299 = vld [vmem:[#allocation5 + $0x5b8] sm:$0xff]
    %v300 = vld [vmem:[#allocation5 + $0x5c0] sm:$0xff]
    %v301 = vld [vmem:[#allocation5 + $0x5c8] sm:$0xff]
    %v302 = vld [vmem:[#allocation5 + $0x5d0] sm:$0xff]
    %v303 = vld [vmem:[#allocation5 + $0x5d8] sm:$0xff]
    %v304 = vld [vmem:[#allocation5 + $0x5e0] sm:$0xff]
    %v305 = vld [vmem:[#allocation5 + $0x5e8] sm:$0xff]
    %v306 = vld [vmem:[#allocation5 + $0x5f0] sm:$0xff]
    %v307 = vld [vmem:[#allocation5 + $0x5f8] sm:$0xff]
    %v308 = vld [vmem:[#allocation5 + $0x600] sm:$0xff]
    %v309 = vld [vmem:[#allocation5 + $0x608] sm:$0xff]
    %v310 = vld [vmem:[#allocation5 + $0x610] sm:$0xff]
    %v311 = vld [vmem:[#allocation5 + $0x618] sm:$0xff]
    %v312 = vld [vmem:[#allocation7] sm:$0xf]
    %v314 = vperm.slane %v312, 0
    %v315 = vperm.slane %v312, 1
    %v316 = vperm.slane %v312, 2
    %v317 = vperm.slane %v312, 3
    %v518 = vunpack.c.l.b16 %v116
    %v519 = vunpack.c.h.b16 %v116
    %v520 = vunpack.c.l.b16 %v117
    %v521 = vunpack.c.h.b16 %v117
    %v522 = vunpack.c.l.b16 %v118
    %v523 = vunpack.c.h.b16 %v118
    %v524 = vunpack.c.l.b16 %v119
    %v525 = vunpack.c.h.b16 %v119
    %v526 = vunpack.c.l.b16 %v120
    %v527 = vunpack.c.h.b16 %v120
    %v528 = vunpack.c.l.b16 %v121
    %v529 = vunpack.c.h.b16 %v121
    %v530 = vunpack.c.l.b16 %v122
    %v531 = vunpack.c.h.b16 %v122
    %v532 = vunpack.c.l.b16 %v123
    %v533 = vunpack.c.h.b16 %v123
    %v534 = vunpack.c.l.b16 %v124
    %v535 = vunpack.c.h.b16 %v124
    %v536 = vunpack.c.l.b16 %v125
    %v537 = vunpack.c.h.b16 %v125
    %v538 = vunpack.c.l.b16 %v126
    %v539 = vunpack.c.h.b16 %v126
    %v540 = vunpack.c.l.b16 %v127
    %v541 = vunpack.c.h.b16 %v127
    %v542 = vunpack.c.l.b16 %v128
    %v543 = vunpack.c.h.b16 %v128
    %v544 = vunpack.c.l.b16 %v129
    %v545 = vunpack.c.h.b16 %v129
    %v546 = vunpack.c.l.b16 %v130
    %v547 = vunpack.c.h.b16 %v130
    %v548 = vunpack.c.l.b16 %v131
    %v549 = vunpack.c.h.b16 %v131
    %v550 = vunpack.c.l.b16 %v132
    %v551 = vunpack.c.h.b16 %v132
    %v552 = vunpack.c.l.b16 %v133
    %v553 = vunpack.c.h.b16 %v133
    %v554 = vunpack.c.l.b16 %v134
    %v555 = vunpack.c.h.b16 %v134
    %v556 = vunpack.c.l.b16 %v135
    %v557 = vunpack.c.h.b16 %v135
    %v558 = vunpack.c.l.b16 %v136
    %v559 = vunpack.c.h.b16 %v136
    %v560 = vunpack.c.l.b16 %v137
    %v561 = vunpack.c.h.b16 %v137
    %v562 = vunpack.c.l.b16 %v138
    %v563 = vunpack.c.h.b16 %v138
    %v564 = vunpack.c.l.b16 %v139
    %v565 = vunpack.c.h.b16 %v139
    %v566 = vunpack.c.l.b16 %v140
    %v567 = vunpack.c.h.b16 %v140
    %v568 = vunpack.c.l.b16 %v141
    %v569 = vunpack.c.h.b16 %v141
    %v570 = vunpack.c.l.b16 %v142
    %v571 = vunpack.c.h.b16 %v142
    %v572 = vunpack.c.l.b16 %v143
    %v573 = vunpack.c.h.b16 %v143
    %v574 = vunpack.c.l.b16 %v144
    %v575 = vunpack.c.h.b16 %v144
    %v576 = vunpack.c.l.b16 %v145
    %v577 = vunpack.c.h.b16 %v145
    %v578 = vunpack.c.l.b16 %v146
    %v579 = vunpack.c.h.b16 %v146
    %v580 = vunpack.c.l.b16 %v147
    %v581 = vunpack.c.h.b16 %v147
    %v582 = vunpack.c.l.b16 %v148
    %v583 = vunpack.c.h.b16 %v148
    %v584 = vunpack.c.l.b16 %v149
    %v585 = vunpack.c.h.b16 %v149
    %v586 = vunpack.c.l.b16 %v150
    %v587 = vunpack.c.h.b16 %v150
    %v588 = vunpack.c.l.b16 %v151
    %v589 = vunpack.c.h.b16 %v151
    %v590 = vunpack.c.l.b16 %v152
    %v591 = vunpack.c.h.b16 %v152
    %v592 = vunpack.c.l.b16 %v153
    %v593 = vunpack.c.h.b16 %v153
    %v594 = vunpack.c.l.b16 %v154
    %v595 = vunpack.c.h.b16 %v154
    %v596 = vunpack.c.l.b16 %v155
    %v597 = vunpack.c.h.b16 %v155
    %v598 = vunpack.c.l.b16 %v156
    %v599 = vunpack.c.h.b16 %v156
    %v600 = vunpack.c.l.b16 %v157
    %v601 = vunpack.c.h.b16 %v157
    %v602 = vunpack.c.l.b16 %v158
    %v603 = vunpack.c.h.b16 %v158
    %v604 = vunpack.c.l.b16 %v159
    %v605 = vunpack.c.h.b16 %v159
    %v606 = vunpack.c.l.b16 %v160
    %v607 = vunpack.c.h.b16 %v160
    %v608 = vunpack.c.l.b16 %v161
    %v609 = vunpack.c.h.b16 %v161
    %v610 = vunpack.c.l.b16 %v162
    %v611 = vunpack.c.h.b16 %v162
    %v612 = vunpack.c.l.b16 %v163
    %v613 = vunpack.c.h.b16 %v163
    %v614 = vunpack.c.l.b16 %v164
    %v615 = vunpack.c.h.b16 %v164
    %v616 = vunpack.c.l.b16 %v165
    %v617 = vunpack.c.h.b16 %v165
    %v618 = vunpack.c.l.b16 %v166
    %v619 = vunpack.c.h.b16 %v166
    %v620 = vunpack.c.l.b16 %v167
    %v621 = vunpack.c.h.b16 %v167
    %v622 = vunpack.c.l.b16 %v168
    %v623 = vunpack.c.h.b16 %v168
    %v624 = vunpack.c.l.b16 %v169
    %v625 = vunpack.c.h.b16 %v169
    %v626 = vunpack.c.l.b16 %v170
    %v627 = vunpack.c.h.b16 %v170
    %v628 = vunpack.c.l.b16 %v171
    %v629 = vunpack.c.h.b16 %v171
    %v630 = vunpack.c.l.b16 %v172
    %v631 = vunpack.c.h.b16 %v172
    %v632 = vunpack.c.l.b16 %v173
    %v633 = vunpack.c.h.b16 %v173
    %v634 = vunpack.c.l.b16 %v174
    %v635 = vunpack.c.h.b16 %v174
    %v636 = vunpack.c.l.b16 %v175
    %v637 = vunpack.c.h.b16 %v175
    %v638 = vunpack.c.l.b16 %v176
    %v639 = vunpack.c.h.b16 %v176
    %v640 = vunpack.c.l.b16 %v177
    %v641 = vunpack.c.h.b16 %v177
    %v642 = vunpack.c.l.b16 %v178
    %v643 = vunpack.c.h.b16 %v178
    %v644 = vunpack.c.l.b16 %v179
    %v645 = vunpack.c.h.b16 %v179
    %v646 = vunpack.c.l.b16 %v180
    %v647 = vunpack.c.h.b16 %v180
    %v648 = vunpack.c.l.b16 %v181
    %v649 = vunpack.c.h.b16 %v181
    %v650 = vunpack.c.l.b16 %v182
    %v651 = vunpack.c.h.b16 %v182
    %v652 = vunpack.c.l.b16 %v183
    %v653 = vunpack.c.h.b16 %v183
    %v654 = vunpack.c.l.b16 %v184
    %v655 = vunpack.c.h.b16 %v184
    %v656 = vunpack.c.l.b16 %v185
    %v657 = vunpack.c.h.b16 %v185
    %v658 = vunpack.c.l.b16 %v186
    %v659 = vunpack.c.h.b16 %v186
    %v660 = vunpack.c.l.b16 %v187
    %v661 = vunpack.c.h.b16 %v187
    %v662 = vunpack.c.l.b16 %v188
    %v663 = vunpack.c.h.b16 %v188
    %v664 = vunpack.c.l.b16 %v189
    %v665 = vunpack.c.h.b16 %v189
    %v666 = vunpack.c.l.b16 %v190
    %v667 = vunpack.c.h.b16 %v190
    %v668 = vunpack.c.l.b16 %v191
    %v669 = vunpack.c.h.b16 %v191
    %v670 = vunpack.c.l.b16 %v192
    %v671 = vunpack.c.h.b16 %v192
    %v672 = vunpack.c.l.b16 %v193
    %v673 = vunpack.c.h.b16 %v193
    %v674 = vunpack.c.l.b16 %v194
    %v675 = vunpack.c.h.b16 %v194
    %v676 = vunpack.c.l.b16 %v195
    %v677 = vunpack.c.h.b16 %v195
    %v678 = vunpack.c.l.b16 %v196
    %v679 = vunpack.c.h.b16 %v196
    %v680 = vunpack.c.l.b16 %v197
    %v681 = vunpack.c.h.b16 %v197
    %v682 = vunpack.c.l.b16 %v198
    %v683 = vunpack.c.h.b16 %v198
    %v684 = vunpack.c.l.b16 %v199
    %v685 = vunpack.c.h.b16 %v199
    %v686 = vunpack.c.l.b16 %v200
    %v687 = vunpack.c.h.b16 %v200
    %v688 = vunpack.c.l.b16 %v201
    %v689 = vunpack.c.h.b16 %v201
    %v690 = vunpack.c.l.b16 %v202
    %v691 = vunpack.c.h.b16 %v202
    %v692 = vunpack.c.l.b16 %v203
    %v693 = vunpack.c.h.b16 %v203
    %v694 = vunpack.c.l.b16 %v204
    %v695 = vunpack.c.h.b16 %v204
    %v696 = vunpack.c.l.b16 %v205
    %v697 = vunpack.c.h.b16 %v205
    %v698 = vunpack.c.l.b16 %v206
    %v699 = vunpack.c.h.b16 %v206
    %v700 = vunpack.c.l.b16 %v207
    %v701 = vunpack.c.h.b16 %v207
    %v702 = vunpack.c.l.b16 %v208
    %v703 = vunpack.c.h.b16 %v208
    %v704 = vunpack.c.l.b16 %v209
    %v705 = vunpack.c.h.b16 %v209
    %v706 = vunpack.c.l.b16 %v210
    %v707 = vunpack.c.h.b16 %v210
    %v708 = vunpack.c.l.b16 %v211
    %v709 = vunpack.c.h.b16 %v211
    %v710 = vunpack.c.l.b16 %v212
    %v711 = vunpack.c.h.b16 %v212
    %v712 = vunpack.c.l.b16 %v213
    %v713 = vunpack.c.h.b16 %v213
    %v714 = vunpack.c.l.b16 %v214
    %v715 = vunpack.c.h.b16 %v214
    %v716 = vunpack.c.l.b16 %v215
    %v717 = vunpack.c.h.b16 %v215
    %v718 = vunpack.c.l.b16 %v216
    %v719 = vunpack.c.h.b16 %v216
    %v720 = vunpack.c.l.b16 %v217
    %v721 = vunpack.c.h.b16 %v217
    %v722 = vunpack.c.l.b16 %v218
    %v723 = vunpack.c.h.b16 %v218
    %v724 = vunpack.c.l.b16 %v219
    %v725 = vunpack.c.h.b16 %v219
    %v726 = vunpack.c.l.b16 %v220
    %v727 = vunpack.c.h.b16 %v220
    %v728 = vunpack.c.l.b16 %v221
    %v729 = vunpack.c.h.b16 %v221
    %v730 = vunpack.c.l.b16 %v222
    %v731 = vunpack.c.h.b16 %v222
    %v732 = vunpack.c.l.b16 %v223
    %v733 = vunpack.c.h.b16 %v223
    %v734 = vunpack.c.l.b16 %v224
    %v735 = vunpack.c.h.b16 %v224
    %v736 = vunpack.c.l.b16 %v225
    %v737 = vunpack.c.h.b16 %v225
    %v738 = vunpack.c.l.b16 %v226
    %v739 = vunpack.c.h.b16 %v226
    %v740 = vunpack.c.l.b16 %v227
    %v741 = vunpack.c.h.b16 %v227
    %v742 = vunpack.c.l.b16 %v228
    %v743 = vunpack.c.h.b16 %v228
    %v744 = vunpack.c.l.b16 %v229
    %v745 = vunpack.c.h.b16 %v229
    %v746 = vunpack.c.l.b16 %v230
    %v747 = vunpack.c.h.b16 %v230
    %v748 = vunpack.c.l.b16 %v231
    %v749 = vunpack.c.h.b16 %v231
    %v750 = vunpack.c.l.b16 %v232
    %v751 = vunpack.c.h.b16 %v232
    %v752 = vunpack.c.l.b16 %v233
    %v753 = vunpack.c.h.b16 %v233
    %v754 = vunpack.c.l.b16 %v234
    %v755 = vunpack.c.h.b16 %v234
    %v756 = vunpack.c.l.b16 %v235
    %v757 = vunpack.c.h.b16 %v235
    %v758 = vunpack.c.l.b16 %v236
    %v759 = vunpack.c.h.b16 %v236
    %v760 = vunpack.c.l.b16 %v237
    %v761 = vunpack.c.h.b16 %v237
    %v762 = vunpack.c.l.b16 %v238
    %v763 = vunpack.c.h.b16 %v238
    %v764 = vunpack.c.l.b16 %v239
    %v765 = vunpack.c.h.b16 %v239
    %v766 = vunpack.c.l.b16 %v240
    %v767 = vunpack.c.h.b16 %v240
    %v768 = vunpack.c.l.b16 %v241
    %v769 = vunpack.c.h.b16 %v241
    %v770 = vunpack.c.l.b16 %v242
    %v771 = vunpack.c.h.b16 %v242
    %v772 = vunpack.c.l.b16 %v243
    %v773 = vunpack.c.h.b16 %v243
    %v774 = vunpack.c.l.b16 %v244
    %v775 = vunpack.c.h.b16 %v244
    %v776 = vunpack.c.l.b16 %v245
    %v777 = vunpack.c.h.b16 %v245
    %v778 = vunpack.c.l.b16 %v246
    %v779 = vunpack.c.h.b16 %v246
    %v780 = vunpack.c.l.b16 %v247
    %v781 = vunpack.c.h.b16 %v247
    %v782 = vunpack.c.l.b16 %v248
    %v783 = vunpack.c.h.b16 %v248
    %v784 = vunpack.c.l.b16 %v249
    %v785 = vunpack.c.h.b16 %v249
    %v786 = vunpack.c.l.b16 %v250
    %v787 = vunpack.c.h.b16 %v250
    %v788 = vunpack.c.l.b16 %v251
    %v789 = vunpack.c.h.b16 %v251
    %v790 = vunpack.c.l.b16 %v252
    %v791 = vunpack.c.h.b16 %v252
    %v792 = vunpack.c.l.b16 %v253
    %v793 = vunpack.c.h.b16 %v253
    %v794 = vunpack.c.l.b16 %v254
    %v795 = vunpack.c.h.b16 %v254
    %v796 = vunpack.c.l.b16 %v255
    %v797 = vunpack.c.h.b16 %v255
    %v798 = vunpack.c.l.b16 %v256
    %v799 = vunpack.c.h.b16 %v256
    %v800 = vunpack.c.l.b16 %v257
    %v801 = vunpack.c.h.b16 %v257
    %v802 = vunpack.c.l.b16 %v258
    %v803 = vunpack.c.h.b16 %v258
    %v804 = vunpack.c.l.b16 %v259
    %v805 = vunpack.c.h.b16 %v259
    %v806 = vunpack.c.l.b16 %v260
    %v807 = vunpack.c.h.b16 %v260
    %v808 = vunpack.c.l.b16 %v261
    %v809 = vunpack.c.h.b16 %v261
    %v810 = vunpack.c.l.b16 %v262
    %v811 = vunpack.c.h.b16 %v262
    %v812 = vunpack.c.l.b16 %v263
    %v813 = vunpack.c.h.b16 %v263
    %v814 = vunpack.c.l.b16 %v264
    %v815 = vunpack.c.h.b16 %v264
    %v816 = vunpack.c.l.b16 %v265
    %v817 = vunpack.c.h.b16 %v265
    %v818 = vunpack.c.l.b16 %v266
    %v819 = vunpack.c.h.b16 %v266
    %v820 = vunpack.c.l.b16 %v267
    %v821 = vunpack.c.h.b16 %v267
    %v822 = vunpack.c.l.b16 %v268
    %v823 = vunpack.c.h.b16 %v268
    %v824 = vunpack.c.l.b16 %v269
    %v825 = vunpack.c.h.b16 %v269
    %v826 = vunpack.c.l.b16 %v270
    %v827 = vunpack.c.h.b16 %v270
    %v828 = vunpack.c.l.b16 %v271
    %v829 = vunpack.c.h.b16 %v271
    %v830 = vunpack.c.l.b16 %v272
    %v831 = vunpack.c.h.b16 %v272
    %v832 = vunpack.c.l.b16 %v273
    %v833 = vunpack.c.h.b16 %v273
    %v834 = vunpack.c.l.b16 %v274
    %v835 = vunpack.c.h.b16 %v274
    %v836 = vunpack.c.l.b16 %v275
    %v837 = vunpack.c.h.b16 %v275
    %v838 = vunpack.c.l.b16 %v276
    %v839 = vunpack.c.h.b16 %v276
    %v840 = vunpack.c.l.b16 %v277
    %v841 = vunpack.c.h.b16 %v277
    %v842 = vunpack.c.l.b16 %v278
    %v843 = vunpack.c.h.b16 %v278
    %v844 = vunpack.c.l.b16 %v279
    %v845 = vunpack.c.h.b16 %v279
    %v846 = vunpack.c.l.b16 %v280
    %v847 = vunpack.c.h.b16 %v280
    %v848 = vunpack.c.l.b16 %v281
    %v849 = vunpack.c.h.b16 %v281
    %v850 = vunpack.c.l.b16 %v282
    %v851 = vunpack.c.h.b16 %v282
    %v852 = vunpack.c.l.b16 %v283
    %v853 = vunpack.c.h.b16 %v283
    %v854 = vunpack.c.l.b16 %v284
    %v855 = vunpack.c.h.b16 %v284
    %v856 = vunpack.c.l.b16 %v285
    %v857 = vunpack.c.h.b16 %v285
    %v858 = vunpack.c.l.b16 %v286
    %v859 = vunpack.c.h.b16 %v286
    %v860 = vunpack.c.l.b16 %v287
    %v861 = vunpack.c.h.b16 %v287
    %v862 = vunpack.c.l.b16 %v288
    %v863 = vunpack.c.h.b16 %v288
    %v864 = vunpack.c.l.b16 %v289
    %v865 = vunpack.c.h.b16 %v289
    %v866 = vunpack.c.l.b16 %v290
    %v867 = vunpack.c.h.b16 %v290
    %v868 = vunpack.c.l.b16 %v291
    %v869 = vunpack.c.h.b16 %v291
    %v870 = vunpack.c.l.b16 %v292
    %v871 = vunpack.c.h.b16 %v292
    %v872 = vunpack.c.l.b16 %v293
    %v873 = vunpack.c.h.b16 %v293
    %v874 = vunpack.c.l.b16 %v294
    %v875 = vunpack.c.h.b16 %v294
    %v876 = vunpack.c.l.b16 %v295
    %v877 = vunpack.c.h.b16 %v295
    %v878 = vunpack.c.l.b16 %v296
    %v879 = vunpack.c.h.b16 %v296
    %v880 = vunpack.c.l.b16 %v297
    %v881 = vunpack.c.h.b16 %v297
    %v882 = vunpack.c.l.b16 %v298
    %v883 = vunpack.c.h.b16 %v298
    %v884 = vunpack.c.l.b16 %v299
    %v885 = vunpack.c.h.b16 %v299
    %v886 = vunpack.c.l.b16 %v300
    %v887 = vunpack.c.h.b16 %v300
    %v888 = vunpack.c.l.b16 %v301
    %v889 = vunpack.c.h.b16 %v301
    %v890 = vunpack.c.l.b16 %v302
    %v891 = vunpack.c.h.b16 %v302
    %v892 = vunpack.c.l.b16 %v303
    %v893 = vunpack.c.h.b16 %v303
    %v894 = vunpack.c.l.b16 %v304
    %v895 = vunpack.c.h.b16 %v304
    %v896 = vunpack.c.l.b16 %v305
    %v897 = vunpack.c.h.b16 %v305
    %v898 = vunpack.c.l.b16 %v306
    %v899 = vunpack.c.h.b16 %v306
    %v900 = vunpack.c.l.b16 %v307
    %v901 = vunpack.c.h.b16 %v307
    %v902 = vunpack.c.l.b16 %v308
    %v903 = vunpack.c.h.b16 %v308
    %v904 = vunpack.c.l.b16 %v309
    %v905 = vunpack.c.h.b16 %v309
    %v906 = vunpack.c.l.b16 %v310
    %v907 = vunpack.c.h.b16 %v310
    %v908 = vunpack.c.l.b16 %v311
    %v909 = vunpack.c.h.b16 %v311
    %v910 = vpack.c.b16 %v522, %v518
    %v911 = vpack.c.b16 %v523, %v519
    %v912 = vpack.c.b16 %v524, %v520
    %v913 = vpack.c.b16 %v525, %v521
    %v914 = vpack.c.b16 %v530, %v526
    %v915 = vpack.c.b16 %v531, %v527
    %v916 = vpack.c.b16 %v532, %v528
    %v917 = vpack.c.b16 %v533, %v529
    %v918 = vpack.c.b16 %v538, %v534
    %v919 = vpack.c.b16 %v539, %v535
    %v920 = vpack.c.b16 %v540, %v536
    %v921 = vpack.c.b16 %v541, %v537
    %v922 = vpack.c.b16 %v546, %v542
    %v923 = vpack.c.b16 %v547, %v543
    %v924 = vpack.c.b16 %v548, %v544
    %v925 = vpack.c.b16 %v549, %v545
    %v926 = vpack.c.b16 %v554, %v550
    %v927 = vpack.c.b16 %v555, %v551
    %v928 = vpack.c.b16 %v556, %v552
    %v929 = vpack.c.b16 %v557, %v553
    %v930 = vpack.c.b16 %v562, %v558
    %v931 = vpack.c.b16 %v563, %v559
    %v932 = vpack.c.b16 %v564, %v560
    %v933 = vpack.c.b16 %v565, %v561
    %v934 = vpack.c.b16 %v570, %v566
    %v935 = vpack.c.b16 %v571, %v567
    %v936 = vpack.c.b16 %v572, %v568
    %v937 = vpack.c.b16 %v573, %v569
    %v938 = vpack.c.b16 %v578, %v574
    %v939 = vpack.c.b16 %v579, %v575
    %v940 = vpack.c.b16 %v580, %v576
    %v941 = vpack.c.b16 %v581, %v577
    %v942 = vpack.c.b16 %v586, %v582
    %v943 = vpack.c.b16 %v587, %v583
    %v944 = vpack.c.b16 %v588, %v584
    %v945 = vpack.c.b16 %v589, %v585
    %v946 = vpack.c.b16 %v594, %v590
    %v947 = vpack.c.b16 %v595, %v591
    %v948 = vpack.c.b16 %v596, %v592
    %v949 = vpack.c.b16 %v597, %v593
    %v950 = vpack.c.b16 %v602, %v598
    %v951 = vpack.c.b16 %v603, %v599
    %v952 = vpack.c.b16 %v604, %v600
    %v953 = vpack.c.b16 %v605, %v601
    %v954 = vpack.c.b16 %v610, %v606
    %v955 = vpack.c.b16 %v611, %v607
    %v956 = vpack.c.b16 %v612, %v608
    %v957 = vpack.c.b16 %v613, %v609
    %v958 = vpack.c.b16 %v618, %v614
    %v959 = vpack.c.b16 %v619, %v615
    %v960 = vpack.c.b16 %v620, %v616
    %v961 = vpack.c.b16 %v621, %v617
    %v962 = vpack.c.b16 %v626, %v622
    %v963 = vpack.c.b16 %v627, %v623
    %v964 = vpack.c.b16 %v628, %v624
    %v965 = vpack.c.b16 %v629, %v625
    %v966 = vpack.c.b16 %v634, %v630
    %v967 = vpack.c.b16 %v635, %v631
    %v968 = vpack.c.b16 %v636, %v632
    %v969 = vpack.c.b16 %v637, %v633
    %v970 = vpack.c.b16 %v642, %v638
    %v971 = vpack.c.b16 %v643, %v639
    %v972 = vpack.c.b16 %v644, %v640
    %v973 = vpack.c.b16 %v645, %v641
    %v974 = vpack.c.b16 %v650, %v646
    %v975 = vpack.c.b16 %v651, %v647
    %v976 = vpack.c.b16 %v652, %v648
    %v977 = vpack.c.b16 %v653, %v649
    %v978 = vpack.c.b16 %v658, %v654
    %v979 = vpack.c.b16 %v659, %v655
    %v980 = vpack.c.b16 %v660, %v656
    %v981 = vpack.c.b16 %v661, %v657
    %v982 = vpack.c.b16 %v666, %v662
    %v983 = vpack.c.b16 %v667, %v663
    %v984 = vpack.c.b16 %v668, %v664
    %v985 = vpack.c.b16 %v669, %v665
    %v986 = vpack.c.b16 %v674, %v670
    %v987 = vpack.c.b16 %v675, %v671
    %v988 = vpack.c.b16 %v676, %v672
    %v989 = vpack.c.b16 %v677, %v673
    %v990 = vpack.c.b16 %v682, %v678
    %v991 = vpack.c.b16 %v683, %v679
    %v992 = vpack.c.b16 %v684, %v680
    %v993 = vpack.c.b16 %v685, %v681
    %v994 = vpack.c.b16 %v690, %v686
    %v995 = vpack.c.b16 %v691, %v687
    %v996 = vpack.c.b16 %v692, %v688
    %v997 = vpack.c.b16 %v693, %v689
    %v998 = vpack.c.b16 %v698, %v694
    %v999 = vpack.c.b16 %v699, %v695
    %v1000 = vpack.c.b16 %v700, %v696
    %v1001 = vpack.c.b16 %v701, %v697
    %v1002 = vpack.c.b16 %v706, %v702
    %v1003 = vpack.c.b16 %v707, %v703
    %v1004 = vpack.c.b16 %v708, %v704
    %v1005 = vpack.c.b16 %v709, %v705
    %v1006 = vpack.c.b16 %v714, %v710
    %v1007 = vpack.c.b16 %v715, %v711
    %v1008 = vpack.c.b16 %v716, %v712
    %v1009 = vpack.c.b16 %v717, %v713
    %v1010 = vpack.c.b16 %v722, %v718
    %v1011 = vpack.c.b16 %v723, %v719
    %v1012 = vpack.c.b16 %v724, %v720
    %v1013 = vpack.c.b16 %v725, %v721
    %v1014 = vpack.c.b16 %v730, %v726
    %v1015 = vpack.c.b16 %v731, %v727
    %v1016 = vpack.c.b16 %v732, %v728
    %v1017 = vpack.c.b16 %v733, %v729
    %v1018 = vpack.c.b16 %v738, %v734
    %v1019 = vpack.c.b16 %v739, %v735
    %v1020 = vpack.c.b16 %v740, %v736
    %v1021 = vpack.c.b16 %v741, %v737
    %v1022 = vpack.c.b16 %v746, %v742
    %v1023 = vpack.c.b16 %v747, %v743
    %v1024 = vpack.c.b16 %v748, %v744
    %v1025 = vpack.c.b16 %v749, %v745
    %v1026 = vpack.c.b16 %v754, %v750
    %v1027 = vpack.c.b16 %v755, %v751
    %v1028 = vpack.c.b16 %v756, %v752
    %v1029 = vpack.c.b16 %v757, %v753
    %v1030 = vpack.c.b16 %v762, %v758
    %v1031 = vpack.c.b16 %v763, %v759
    %v1032 = vpack.c.b16 %v764, %v760
    %v1033 = vpack.c.b16 %v765, %v761
    %v1034 = vpack.c.b16 %v770, %v766
    %v1035 = vpack.c.b16 %v771, %v767
    %v1036 = vpack.c.b16 %v772, %v768
    %v1037 = vpack.c.b16 %v773, %v769
    %v1038 = vpack.c.b16 %v778, %v774
    %v1039 = vpack.c.b16 %v779, %v775
    %v1040 = vpack.c.b16 %v780, %v776
    %v1041 = vpack.c.b16 %v781, %v777
    %v1042 = vpack.c.b16 %v786, %v782
    %v1043 = vpack.c.b16 %v787, %v783
    %v1044 = vpack.c.b16 %v788, %v784
    %v1045 = vpack.c.b16 %v789, %v785
    %v1046 = vpack.c.b16 %v794, %v790
    %v1047 = vpack.c.b16 %v795, %v791
    %v1048 = vpack.c.b16 %v796, %v792
    %v1049 = vpack.c.b16 %v797, %v793
    %v1050 = vpack.c.b16 %v802, %v798
    %v1051 = vpack.c.b16 %v803, %v799
    %v1052 = vpack.c.b16 %v804, %v800
    %v1053 = vpack.c.b16 %v805, %v801
    %v1054 = vpack.c.b16 %v810, %v806
    %v1055 = vpack.c.b16 %v811, %v807
    %v1056 = vpack.c.b16 %v812, %v808
    %v1057 = vpack.c.b16 %v813, %v809
    %v1058 = vpack.c.b16 %v818, %v814
    %v1059 = vpack.c.b16 %v819, %v815
    %v1060 = vpack.c.b16 %v820, %v816
    %v1061 = vpack.c.b16 %v821, %v817
    %v1062 = vpack.c.b16 %v826, %v822
    %v1063 = vpack.c.b16 %v827, %v823
    %v1064 = vpack.c.b16 %v828, %v824
    %v1065 = vpack.c.b16 %v829, %v825
    %v1066 = vpack.c.b16 %v834, %v830
    %v1067 = vpack.c.b16 %v835, %v831
    %v1068 = vpack.c.b16 %v836, %v832
    %v1069 = vpack.c.b16 %v837, %v833
    %v1070 = vpack.c.b16 %v842, %v838
    %v1071 = vpack.c.b16 %v843, %v839
    %v1072 = vpack.c.b16 %v844, %v840
    %v1073 = vpack.c.b16 %v845, %v841
    %v1074 = vpack.c.b16 %v850, %v846
    %v1075 = vpack.c.b16 %v851, %v847
    %v1076 = vpack.c.b16 %v852, %v848
    %v1077 = vpack.c.b16 %v853, %v849
    %v1078 = vpack.c.b16 %v858, %v854
    %v1079 = vpack.c.b16 %v859, %v855
    %v1080 = vpack.c.b16 %v860, %v856
    %v1081 = vpack.c.b16 %v861, %v857
    %v1082 = vpack.c.b16 %v866, %v862
    %v1083 = vpack.c.b16 %v867, %v863
    %v1084 = vpack.c.b16 %v868, %v864
    %v1085 = vpack.c.b16 %v869, %v865
    %v1086 = vpack.c.b16 %v874, %v870
    %v1087 = vpack.c.b16 %v875, %v871
    %v1088 = vpack.c.b16 %v876, %v872
    %v1089 = vpack.c.b16 %v877, %v873
    %v1090 = vpack.c.b16 %v882, %v878
    %v1091 = vpack.c.b16 %v883, %v879
    %v1092 = vpack.c.b16 %v884, %v880
    %v1093 = vpack.c.b16 %v885, %v881
    %v1094 = vpack.c.b16 %v890, %v886
    %v1095 = vpack.c.b16 %v891, %v887
    %v1096 = vpack.c.b16 %v892, %v888
    %v1097 = vpack.c.b16 %v893, %v889
    %v1098 = vpack.c.b16 %v898, %v894
    %v1099 = vpack.c.b16 %v899, %v895
    %v1100 = vpack.c.b16 %v900, %v896
    %v1101 = vpack.c.b16 %v901, %v897
    %v1102 = vpack.c.b16 %v906, %v902
    %v1103 = vpack.c.b16 %v907, %v903
    %v1104 = vpack.c.b16 %v908, %v904
    %v1105 = vpack.c.b16 %v909, %v905
    %vm1302 = vcmask 130048
    %v1304 = vsel %vm1302, %v115, 0
    %1306 = vmatpush.bf16.msra.mxu0 %v938
    %1307 = vmatpush.bf16.msra.mxu0 %v934
    %1308 = vmatpush.bf16.msra.mxu0 %v930
    %1309 = vmatpush.bf16.msra.mxu0 %v926
    %1310 = vmatpush.bf16.msra.mxu0 %v922
    %1311 = vmatpush.bf16.msra.mxu0 %v918
    %1312 = vmatpush.bf16.msra.mxu0 %v914
    %1313 = vmatpush.bf16.msra.mxu0 %v910
    %1314 = vmatmul.bf16.gmra.mxu0 %v109
    %v1315 = vpop.f32.mrf.mxu0
    %v1316 = vadd.f32 %v314, %v1315
    %v1317 = vpop.f32.mrf.mxu0
    %1318 = vdwg.mxu0
    %1319 = vmatpush.bf16.msra.mxu0 %v970
    %1320 = vmatpush.bf16.msra.mxu0 %v966
    %1321 = vmatpush.bf16.msra.mxu0 %v962
    %1322 = vmatpush.bf16.msra.mxu0 %v958
    %1323 = vmatpush.bf16.msra.mxu0 %v954
    %1324 = vmatpush.bf16.msra.mxu0 %v950
    %1325 = vmatpush.bf16.msra.mxu0 %v946
    %1326 = vmatpush.bf16.msra.mxu0 %v942
    %1327 = vmatmul.bf16.gmra.mxu0 %v110
    %v1328 = vpop.f32.mrf.mxu0
    %v1329 = vadd.f32 %v1316, %v1328
    %v1330 = vpop.f32.mrf.mxu0
    %1331 = vdwg.mxu0
    %1332 = vmatpush.bf16.msra.mxu0 %v1002
    %1333 = vmatpush.bf16.msra.mxu0 %v998
    %1334 = vmatpush.bf16.msra.mxu0 %v994
    %1335 = vmatpush.bf16.msra.mxu0 %v990
    %1336 = vmatpush.bf16.msra.mxu0 %v986
    %1337 = vmatpush.bf16.msra.mxu0 %v982
    %1338 = vmatpush.bf16.msra.mxu0 %v978
    %1339 = vmatpush.bf16.msra.mxu0 %v974
    %1340 = vmatmul.bf16.gmra.mxu0 %v111
    %v1341 = vpop.f32.mrf.mxu0
    %v1342 = vadd.f32 %v1329, %v1341
    %v1343 = vpop.f32.mrf.mxu0
    %1344 = vdwg.mxu0
    %1345 = vmatpush.bf16.msra.mxu0 %v1034
    %1346 = vmatpush.bf16.msra.mxu0 %v1030
    %1347 = vmatpush.bf16.msra.mxu0 %v1026
    %1348 = vmatpush.bf16.msra.mxu0 %v1022
    %1349 = vmatpush.bf16.msra.mxu0 %v1018
    %1350 = vmatpush.bf16.msra.mxu0 %v1014
    %1351 = vmatpush.bf16.msra.mxu0 %v1010
    %1352 = vmatpush.bf16.msra.mxu0 %v1006
    %1353 = vmatmul.bf16.gmra.mxu0 %v112
    %v1354 = vpop.f32.mrf.mxu0
    %v1355 = vadd.f32 %v1342, %v1354
    %v1356 = vpop.f32.mrf.mxu0
    %1357 = vdwg.mxu0
    %1358 = vmatpush.bf16.msra.mxu0 %v1066
    %1359 = vmatpush.bf16.msra.mxu0 %v1062
    %1360 = vmatpush.bf16.msra.mxu0 %v1058
    %1361 = vmatpush.bf16.msra.mxu0 %v1054
    %1362 = vmatpush.bf16.msra.mxu0 %v1050
    %1363 = vmatpush.bf16.msra.mxu0 %v1046
    %1364 = vmatpush.bf16.msra.mxu0 %v1042
    %1365 = vmatpush.bf16.msra.mxu0 %v1038
    %1366 = vmatmul.bf16.gmra.mxu0 %v113
    %v1367 = vpop.f32.mrf.mxu0
    %v1368 = vadd.f32 %v1355, %v1367
    %v1369 = vpop.f32.mrf.mxu0
    %1370 = vdwg.mxu0
    %1371 = vmatpush.bf16.msra.mxu0 %v1098
    %1372 = vmatpush.bf16.msra.mxu0 %v1094
    %1373 = vmatpush.bf16.msra.mxu0 %v1090
    %1374 = vmatpush.bf16.msra.mxu0 %v1086
    %1375 = vmatpush.bf16.msra.mxu0 %v1082
    %1376 = vmatpush.bf16.msra.mxu0 %v1078
    %1377 = vmatpush.bf16.msra.mxu0 %v1074
    %1378 = vmatpush.bf16.msra.mxu0 %v1070
    %1379 = vmatmul.bf16.gmra.mxu0 %v114
    %v1380 = vpop.f32.mrf.mxu0
    %v1381 = vadd.f32 %v1368, %v1380
    %v1382 = vpop.f32.mrf.mxu0
    %1383 = vdwg.mxu0
    %1384 = vmatpush.bf16.msra.mxu0 0
    %1385 = vmatpush.bf16.msra.mxu0 0
    %1386 = vmatpush.bf16.msra.mxu0 0
    %1387 = vmatpush.bf16.msra.mxu0 0
    %1388 = vmatpush.bf16.msra.mxu0 0
    %1389 = vmatpush.bf16.msra.mxu0 0
    %1390 = vmatpush.bf16.msra.mxu0 0
    %1391 = vmatpush.bf16.msra.mxu0 %v1102
    %1392 = vmatmul.bf16.gmra.mxu0 %v1304
    %v1393 = vpop.f32.mrf.mxu0
    %v1394 = vadd.f32 %v1381, %v1393
    %v1395 = vpop.f32.mrf.mxu0
    %1396 = vdwg.mxu0
    %1397 = vmatpush.bf16.msra.mxu0 %v939
    %1398 = vmatpush.bf16.msra.mxu0 %v935
    %1399 = vmatpush.bf16.msra.mxu0 %v931
    %1400 = vmatpush.bf16.msra.mxu0 %v927
    %1401 = vmatpush.bf16.msra.mxu0 %v923
    %1402 = vmatpush.bf16.msra.mxu0 %v919
    %1403 = vmatpush.bf16.msra.mxu0 %v915
    %1404 = vmatpush.bf16.msra.mxu0 %v911
    %1405 = vmatmul.bf16.gmra.mxu0 %v109
    %v1406 = vpop.f32.mrf.mxu0
    %v1407 = vadd.f32 %v315, %v1406
    %v1408 = vpop.f32.mrf.mxu0
    %1409 = vdwg.mxu0
    %1410 = vmatpush.bf16.msra.mxu0 %v971
    %1411 = vmatpush.bf16.msra.mxu0 %v967
    %1412 = vmatpush.bf16.msra.mxu0 %v963
    %1413 = vmatpush.bf16.msra.mxu0 %v959
    %1414 = vmatpush.bf16.msra.mxu0 %v955
    %1415 = vmatpush.bf16.msra.mxu0 %v951
    %1416 = vmatpush.bf16.msra.mxu0 %v947
    %1417 = vmatpush.bf16.msra.mxu0 %v943
    %1418 = vmatmul.bf16.gmra.mxu0 %v110
    %v1419 = vpop.f32.mrf.mxu0
    %v1420 = vadd.f32 %v1407, %v1419
    %v1421 = vpop.f32.mrf.mxu0
    %1422 = vdwg.mxu0
    %1423 = vmatpush.bf16.msra.mxu0 %v1003
    %1424 = vmatpush.bf16.msra.mxu0 %v999
    %1425 = vmatpush.bf16.msra.mxu0 %v995
    %1426 = vmatpush.bf16.msra.mxu0 %v991
    %1427 = vmatpush.bf16.msra.mxu0 %v987
    %1428 = vmatpush.bf16.msra.mxu0 %v983
    %1429 = vmatpush.bf16.msra.mxu0 %v979
    %1430 = vmatpush.bf16.msra.mxu0 %v975
    %1431 = vmatmul.bf16.gmra.mxu0 %v111
    %v1432 = vpop.f32.mrf.mxu0
    %v1433 = vadd.f32 %v1420, %v1432
    %v1434 = vpop.f32.mrf.mxu0
    %1435 = vdwg.mxu0
    %1436 = vmatpush.bf16.msra.mxu0 %v1035
    %1437 = vmatpush.bf16.msra.mxu0 %v1031
    %1438 = vmatpush.bf16.msra.mxu0 %v1027
    %1439 = vmatpush.bf16.msra.mxu0 %v1023
    %1440 = vmatpush.bf16.msra.mxu0 %v1019
    %1441 = vmatpush.bf16.msra.mxu0 %v1015
    %1442 = vmatpush.bf16.msra.mxu0 %v1011
    %1443 = vmatpush.bf16.msra.mxu0 %v1007
    %1444 = vmatmul.bf16.gmra.mxu0 %v112
    %v1445 = vpop.f32.mrf.mxu0
    %v1446 = vadd.f32 %v1433, %v1445
    %v1447 = vpop.f32.mrf.mxu0
    %1448 = vdwg.mxu0
    %1449 = vmatpush.bf16.msra.mxu0 %v1067
    %1450 = vmatpush.bf16.msra.mxu0 %v1063
    %1451 = vmatpush.bf16.msra.mxu0 %v1059
    %1452 = vmatpush.bf16.msra.mxu0 %v1055
    %1453 = vmatpush.bf16.msra.mxu0 %v1051
    %1454 = vmatpush.bf16.msra.mxu0 %v1047
    %1455 = vmatpush.bf16.msra.mxu0 %v1043
    %1456 = vmatpush.bf16.msra.mxu0 %v1039
    %1457 = vmatmul.bf16.gmra.mxu0 %v113
    %v1458 = vpop.f32.mrf.mxu0
    %v1459 = vadd.f32 %v1446, %v1458
    %v1460 = vpop.f32.mrf.mxu0
    %1461 = vdwg.mxu0
    %1462 = vmatpush.bf16.msra.mxu0 %v1099
    %1463 = vmatpush.bf16.msra.mxu0 %v1095
    %1464 = vmatpush.bf16.msra.mxu0 %v1091
    %1465 = vmatpush.bf16.msra.mxu0 %v1087
    %1466 = vmatpush.bf16.msra.mxu0 %v1083
    %1467 = vmatpush.bf16.msra.mxu0 %v1079
    %1468 = vmatpush.bf16.msra.mxu0 %v1075
    %1469 = vmatpush.bf16.msra.mxu0 %v1071
    %1470 = vmatmul.bf16.gmra.mxu0 %v114
    %v1471 = vpop.f32.mrf.mxu0
    %v1472 = vadd.f32 %v1459, %v1471
    %v1473 = vpop.f32.mrf.mxu0
    %1474 = vdwg.mxu0
    %1475 = vmatpush.bf16.msra.mxu0 0
    %1476 = vmatpush.bf16.msra.mxu0 0
    %1477 = vmatpush.bf16.msra.mxu0 0
    %1478 = vmatpush.bf16.msra.mxu0 0
    %1479 = vmatpush.bf16.msra.mxu0 0
    %1480 = vmatpush.bf16.msra.mxu0 0
    %1481 = vmatpush.bf16.msra.mxu0 0
    %1482 = vmatpush.bf16.msra.mxu0 %v1103
    %1483 = vmatmul.bf16.gmra.mxu0 %v1304
    %v1484 = vpop.f32.mrf.mxu0
    %v1485 = vadd.f32 %v1472, %v1484
    %v1486 = vpop.f32.mrf.mxu0
    %1487 = vdwg.mxu0
    %1488 = vmatpush.bf16.msra.mxu0 %v940
    %1489 = vmatpush.bf16.msra.mxu0 %v936
    %1490 = vmatpush.bf16.msra.mxu0 %v932
    %1491 = vmatpush.bf16.msra.mxu0 %v928
    %1492 = vmatpush.bf16.msra.mxu0 %v924
    %1493 = vmatpush.bf16.msra.mxu0 %v920
    %1494 = vmatpush.bf16.msra.mxu0 %v916
    %1495 = vmatpush.bf16.msra.mxu0 %v912
    %1496 = vmatmul.bf16.gmra.mxu0 %v109
    %v1497 = vpop.f32.mrf.mxu0
    %v1498 = vadd.f32 %v316, %v1497
    %v1499 = vpop.f32.mrf.mxu0
    %1500 = vdwg.mxu0
    %1501 = vmatpush.bf16.msra.mxu0 %v972
    %1502 = vmatpush.bf16.msra.mxu0 %v968
    %1503 = vmatpush.bf16.msra.mxu0 %v964
    %1504 = vmatpush.bf16.msra.mxu0 %v960
    %1505 = vmatpush.bf16.msra.mxu0 %v956
    %1506 = vmatpush.bf16.msra.mxu0 %v952
    %1507 = vmatpush.bf16.msra.mxu0 %v948
    %1508 = vmatpush.bf16.msra.mxu0 %v944
    %1509 = vmatmul.bf16.gmra.mxu0 %v110
    %v1510 = vpop.f32.mrf.mxu0
    %v1511 = vadd.f32 %v1498, %v1510
    %v1512 = vpop.f32.mrf.mxu0
    %1513 = vdwg.mxu0
    %1514 = vmatpush.bf16.msra.mxu0 %v1004
    %1515 = vmatpush.bf16.msra.mxu0 %v1000
    %1516 = vmatpush.bf16.msra.mxu0 %v996
    %1517 = vmatpush.bf16.msra.mxu0 %v992
    %1518 = vmatpush.bf16.msra.mxu0 %v988
    %1519 = vmatpush.bf16.msra.mxu0 %v984
    %1520 = vmatpush.bf16.msra.mxu0 %v980
    %1521 = vmatpush.bf16.msra.mxu0 %v976
    %1522 = vmatmul.bf16.gmra.mxu0 %v111
    %v1523 = vpop.f32.mrf.mxu0
    %v1524 = vadd.f32 %v1511, %v1523
    %v1525 = vpop.f32.mrf.mxu0
    %1526 = vdwg.mxu0
    %1527 = vmatpush.bf16.msra.mxu0 %v1036
    %1528 = vmatpush.bf16.msra.mxu0 %v1032
    %1529 = vmatpush.bf16.msra.mxu0 %v1028
    %1530 = vmatpush.bf16.msra.mxu0 %v1024
    %1531 = vmatpush.bf16.msra.mxu0 %v1020
    %1532 = vmatpush.bf16.msra.mxu0 %v1016
    %1533 = vmatpush.bf16.msra.mxu0 %v1012
    %1534 = vmatpush.bf16.msra.mxu0 %v1008
    %1535 = vmatmul.bf16.gmra.mxu0 %v112
    %v1536 = vpop.f32.mrf.mxu0
    %v1537 = vadd.f32 %v1524, %v1536
    %v1538 = vpop.f32.mrf.mxu0
    %1539 = vdwg.mxu0
    %1540 = vmatpush.bf16.msra.mxu0 %v1068
    %1541 = vmatpush.bf16.msra.mxu0 %v1064
    %1542 = vmatpush.bf16.msra.mxu0 %v1060
    %1543 = vmatpush.bf16.msra.mxu0 %v1056
    %1544 = vmatpush.bf16.msra.mxu0 %v1052
    %1545 = vmatpush.bf16.msra.mxu0 %v1048
    %1546 = vmatpush.bf16.msra.mxu0 %v1044
    %1547 = vmatpush.bf16.msra.mxu0 %v1040
    %1548 = vmatmul.bf16.gmra.mxu0 %v113
    %v1549 = vpop.f32.mrf.mxu0
    %v1550 = vadd.f32 %v1537, %v1549
    %v1551 = vpop.f32.mrf.mxu0
    %1552 = vdwg.mxu0
    %1553 = vmatpush.bf16.msra.mxu0 %v1100
    %1554 = vmatpush.bf16.msra.mxu0 %v1096
    %1555 = vmatpush.bf16.msra.mxu0 %v1092
    %1556 = vmatpush.bf16.msra.mxu0 %v1088
    %1557 = vmatpush.bf16.msra.mxu0 %v1084
    %1558 = vmatpush.bf16.msra.mxu0 %v1080
    %1559 = vmatpush.bf16.msra.mxu0 %v1076
    %1560 = vmatpush.bf16.msra.mxu0 %v1072
    %1561 = vmatmul.bf16.gmra.mxu0 %v114
    %v1562 = vpop.f32.mrf.mxu0
    %v1563 = vadd.f32 %v1550, %v1562
    %v1564 = vpop.f32.mrf.mxu0
    %1565 = vdwg.mxu0
    %1566 = vmatpush.bf16.msra.mxu0 0
    %1567 = vmatpush.bf16.msra.mxu0 0
    %1568 = vmatpush.bf16.msra.mxu0 0
    %1569 = vmatpush.bf16.msra.mxu0 0
    %1570 = vmatpush.bf16.msra.mxu0 0
    %1571 = vmatpush.bf16.msra.mxu0 0
    %1572 = vmatpush.bf16.msra.mxu0 0
    %1573 = vmatpush.bf16.msra.mxu0 %v1104
    %1574 = vmatmul.bf16.gmra.mxu0 %v1304
    %v1575 = vpop.f32.mrf.mxu0
    %v1576 = vadd.f32 %v1563, %v1575
    %v1577 = vpop.f32.mrf.mxu0
    %1578 = vdwg.mxu0
    %1579 = vmatpush.bf16.msra.mxu0 %v941
    %1580 = vmatpush.bf16.msra.mxu0 %v937
    %1581 = vmatpush.bf16.msra.mxu0 %v933
    %1582 = vmatpush.bf16.msra.mxu0 %v929
    %1583 = vmatpush.bf16.msra.mxu0 %v925
    %1584 = vmatpush.bf16.msra.mxu0 %v921
    %1585 = vmatpush.bf16.msra.mxu0 %v917
    %1586 = vmatpush.bf16.msra.mxu0 %v913
    %1587 = vmatmul.bf16.gmra.mxu0 %v109
    %v1588 = vpop.f32.mrf.mxu0
    %v1589 = vadd.f32 %v317, %v1588
    %v1590 = vpop.f32.mrf.mxu0
    %1591 = vdwg.mxu0
    %1592 = vmatpush.bf16.msra.mxu0 %v973
    %1593 = vmatpush.bf16.msra.mxu0 %v969
    %1594 = vmatpush.bf16.msra.mxu0 %v965
    %1595 = vmatpush.bf16.msra.mxu0 %v961
    %1596 = vmatpush.bf16.msra.mxu0 %v957
    %1597 = vmatpush.bf16.msra.mxu0 %v953
    %1598 = vmatpush.bf16.msra.mxu0 %v949
    %1599 = vmatpush.bf16.msra.mxu0 %v945
    %1600 = vmatmul.bf16.gmra.mxu0 %v110
    %v1601 = vpop.f32.mrf.mxu0
    %v1602 = vadd.f32 %v1589, %v1601
    %v1603 = vpop.f32.mrf.mxu0
    %1604 = vdwg.mxu0
    %1605 = vmatpush.bf16.msra.mxu0 %v1005
    %1606 = vmatpush.bf16.msra.mxu0 %v1001
    %1607 = vmatpush.bf16.msra.mxu0 %v997
    %1608 = vmatpush.bf16.msra.mxu0 %v993
    %1609 = vmatpush.bf16.msra.mxu0 %v989
    %1610 = vmatpush.bf16.msra.mxu0 %v985
    %1611 = vmatpush.bf16.msra.mxu0 %v981
    %1612 = vmatpush.bf16.msra.mxu0 %v977
    %1613 = vmatmul.bf16.gmra.mxu0 %v111
    %v1614 = vpop.f32.mrf.mxu0
    %v1615 = vadd.f32 %v1602, %v1614
    %v1616 = vpop.f32.mrf.mxu0
    %1617 = vdwg.mxu0
    %1618 = vmatpush.bf16.msra.mxu0 %v1037
    %1619 = vmatpush.bf16.msra.mxu0 %v1033
    %1620 = vmatpush.bf16.msra.mxu0 %v1029
    %1621 = vmatpush.bf16.msra.mxu0 %v1025
    %1622 = vmatpush.bf16.msra.mxu0 %v1021
    %1623 = vmatpush.bf16.msra.mxu0 %v1017
    %1624 = vmatpush.bf16.msra.mxu0 %v1013
    %1625 = vmatpush.bf16.msra.mxu0 %v1009
    %1626 = vmatmul.bf16.gmra.mxu0 %v112
    %v1627 = vpop.f32.mrf.mxu0
    %v1628 = vadd.f32 %v1615, %v1627
    %v1629 = vpop.f32.mrf.mxu0
    %1630 = vdwg.mxu0
    %1631 = vmatpush.bf16.msra.mxu0 %v1069
    %1632 = vmatpush.bf16.msra.mxu0 %v1065
    %1633 = vmatpush.bf16.msra.mxu0 %v1061
    %1634 = vmatpush.bf16.msra.mxu0 %v1057
    %1635 = vmatpush.bf16.msra.mxu0 %v1053
    %1636 = vmatpush.bf16.msra.mxu0 %v1049
    %1637 = vmatpush.bf16.msra.mxu0 %v1045
    %1638 = vmatpush.bf16.msra.mxu0 %v1041
    %1639 = vmatmul.bf16.gmra.mxu0 %v113
    %v1640 = vpop.f32.mrf.mxu0
    %v1641 = vadd.f32 %v1628, %v1640
    %v1642 = vpop.f32.mrf.mxu0
    %1643 = vdwg.mxu0
    %1644 = vmatpush.bf16.msra.mxu0 %v1101
    %1645 = vmatpush.bf16.msra.mxu0 %v1097
    %1646 = vmatpush.bf16.msra.mxu0 %v1093
    %1647 = vmatpush.bf16.msra.mxu0 %v1089
    %1648 = vmatpush.bf16.msra.mxu0 %v1085
    %1649 = vmatpush.bf16.msra.mxu0 %v1081
    %1650 = vmatpush.bf16.msra.mxu0 %v1077
    %1651 = vmatpush.bf16.msra.mxu0 %v1073
    %1652 = vmatmul.bf16.gmra.mxu0 %v114
    %v1653 = vpop.f32.mrf.mxu0
    %v1654 = vadd.f32 %v1641, %v1653
    %v1655 = vpop.f32.mrf.mxu0
    %1656 = vdwg.mxu0
    %1657 = vmatpush.bf16.msra.mxu0 0
    %1658 = vmatpush.bf16.msra.mxu0 0
    %1659 = vmatpush.bf16.msra.mxu0 0
    %1660 = vmatpush.bf16.msra.mxu0 0
    %1661 = vmatpush.bf16.msra.mxu0 0
    %1662 = vmatpush.bf16.msra.mxu0 0
    %1663 = vmatpush.bf16.msra.mxu0 0
    %1664 = vmatpush.bf16.msra.mxu0 %v1105
    %1665 = vmatmul.bf16.gmra.mxu0 %v1304
    %v1666 = vpop.f32.mrf.mxu0
    %v1667 = vadd.f32 %v1654, %v1666
    %v1668 = vpop.f32.mrf.mxu0
    %1669 = vdwg.mxu0
    %v1670 = vmax.f32 %v1394, 0.0
    %v1671 = vmax.f32 %v1485, 0.0
    %v1672 = vmax.f32 %v1576, 0.0
    %v1673 = vmax.f32 %v1667, 0.0
    %v1674 = vpack.c.bf16 %v1670, %v1670
    %v1675 = vpack.c.bf16 %v1671, %v1671
    %v1676 = vpack.c.bf16 %v1672, %v1672
    %v1677 = vpack.c.bf16 %v1673, %v1673
    %v1678 = vld [vmem:[#allocation8] sm:$0xff]
    %v1679 = vld [vmem:[#allocation8 + $0x8] sm:$0xff]
    %v1680 = vld [vmem:[#allocation8 + $0x10] sm:$0xff]
    %v1681 = vld [vmem:[#allocation8 + $0x18] sm:$0xff]
    %v1682 = vld [vmem:[#allocation8 + $0x20] sm:$0xff]
    %v1683 = vld [vmem:[#allocation8 + $0x28] sm:$0xff]
    %v1684 = vld [vmem:[#allocation8 + $0x30] sm:$0xff]
    %v1685 = vld [vmem:[#allocation8 + $0x38] sm:$0xff]
    %v1686 = vld [vmem:[#allocation8 + $0x40] sm:$0xff]
    %v1687 = vld [vmem:[#allocation8 + $0x48] sm:$0xff]
    %v1688 = vld [vmem:[#allocation8 + $0x50] sm:$0xff]
    %v1689 = vld [vmem:[#allocation8 + $0x58] sm:$0xff]
    %v1690 = vld [vmem:[#allocation8 + $0x60] sm:$0xff]
    %v1691 = vld [vmem:[#allocation8 + $0x68] sm:$0xff]
    %v1692 = vld [vmem:[#allocation8 + $0x70] sm:$0xff]
    %v1693 = vld [vmem:[#allocation8 + $0x78] sm:$0xff]
    %v1694 = vld [vmem:[#allocation8 + $0x80] sm:$0xff]
    %v1695 = vld [vmem:[#allocation8 + $0x88] sm:$0xff]
    %v1696 = vld [vmem:[#allocation8 + $0x90] sm:$0xff]
    %v1697 = vld [vmem:[#allocation8 + $0x98] sm:$0xff]
    %v1698 = vld [vmem:[#allocation8 + $0xa0] sm:$0xff]
    %v1699 = vld [vmem:[#allocation8 + $0xa8] sm:$0xff]
    %v1700 = vld [vmem:[#allocation8 + $0xb0] sm:$0xff]
    %v1701 = vld [vmem:[#allocation8 + $0xb8] sm:$0xff]
    %v1702 = vld [vmem:[#allocation8 + $0xc0] sm:$0xff]
    %v1703 = vld [vmem:[#allocation8 + $0xc8] sm:$0xff]
    %v1704 = vld [vmem:[#allocation8 + $0xd0] sm:$0xff]
    %v1705 = vld [vmem:[#allocation8 + $0xd8] sm:$0xff]
    %v1706 = vld [vmem:[#allocation8 + $0xe0] sm:$0xff]
    %v1707 = vld [vmem:[#allocation8 + $0xe8] sm:$0xff]
    %v1708 = vld [vmem:[#allocation8 + $0xf0] sm:$0xff]
    %v1709 = vld [vmem:[#allocation8 + $0xf8] sm:$0xff]
    %v1710 = vld [vmem:[#allocation8 + $0x100] sm:$0xff]
    %v1711 = vld [vmem:[#allocation8 + $0x108] sm:$0xff]
    %v1712 = vld [vmem:[#allocation8 + $0x110] sm:$0xff]
    %v1713 = vld [vmem:[#allocation8 + $0x118] sm:$0xff]
    %v1714 = vld [vmem:[#allocation8 + $0x120] sm:$0xff]
    %v1715 = vld [vmem:[#allocation8 + $0x128] sm:$0xff]
    %v1716 = vld [vmem:[#allocation8 + $0x130] sm:$0xff]
    %v1717 = vld [vmem:[#allocation8 + $0x138] sm:$0xff]
    %v1718 = vld [vmem:[#allocation8 + $0x140] sm:$0xff]
    %v1719 = vld [vmem:[#allocation8 + $0x148] sm:$0xff]
    %v1720 = vld [vmem:[#allocation8 + $0x150] sm:$0xff]
    %v1721 = vld [vmem:[#allocation8 + $0x158] sm:$0xff]
    %v1722 = vld [vmem:[#allocation8 + $0x160] sm:$0xff]
    %v1723 = vld [vmem:[#allocation8 + $0x168] sm:$0xff]
    %v1724 = vld [vmem:[#allocation8 + $0x170] sm:$0xff]
    %v1725 = vld [vmem:[#allocation8 + $0x178] sm:$0xff]
    %v1726 = vld [vmem:[#allocation8 + $0x180] sm:$0xff]
    %v1727 = vld [vmem:[#allocation8 + $0x188] sm:$0xff]
    %v1728 = vld [vmem:[#allocation8 + $0x190] sm:$0xff]
    %v1729 = vld [vmem:[#allocation8 + $0x198] sm:$0xff]
    %v1730 = vld [vmem:[#allocation8 + $0x1a0] sm:$0xff]
    %v1731 = vld [vmem:[#allocation8 + $0x1a8] sm:$0xff]
    %v1732 = vld [vmem:[#allocation8 + $0x1b0] sm:$0xff]
    %v1733 = vld [vmem:[#allocation8 + $0x1b8] sm:$0xff]
    %v1734 = vld [vmem:[#allocation8 + $0x1c0] sm:$0xff]
    %v1735 = vld [vmem:[#allocation8 + $0x1c8] sm:$0xff]
    %v1736 = vld [vmem:[#allocation8 + $0x1d0] sm:$0xff]
    %v1737 = vld [vmem:[#allocation8 + $0x1d8] sm:$0xff]
    %v1738 = vld [vmem:[#allocation8 + $0x1e0] sm:$0xff]
    %v1739 = vld [vmem:[#allocation8 + $0x1e8] sm:$0xff]
    %v1740 = vld [vmem:[#allocation8 + $0x1f0] sm:$0xff]
    %v1741 = vld [vmem:[#allocation8 + $0x1f8] sm:$0xff]
    %v1742 = vld [vmem:[%s4] sm:$0x3]
    %v1744 = vperm.slane %v1742, 0
    %v1745 = vperm.slane %v1742, 1
    %v1812 = vunpack.c.l.b16 %v1678
    %v1813 = vunpack.c.h.b16 %v1678
    %v1814 = vunpack.c.l.b16 %v1679
    %v1815 = vunpack.c.h.b16 %v1679
    %v1816 = vunpack.c.l.b16 %v1680
    %v1817 = vunpack.c.h.b16 %v1680
    %v1818 = vunpack.c.l.b16 %v1681
    %v1819 = vunpack.c.h.b16 %v1681
    %v1820 = vunpack.c.l.b16 %v1682
    %v1821 = vunpack.c.h.b16 %v1682
    %v1822 = vunpack.c.l.b16 %v1683
    %v1823 = vunpack.c.h.b16 %v1683
    %v1824 = vunpack.c.l.b16 %v1684
    %v1825 = vunpack.c.h.b16 %v1684
    %v1826 = vunpack.c.l.b16 %v1685
    %v1827 = vunpack.c.h.b16 %v1685
    %v1828 = vunpack.c.l.b16 %v1686
    %v1829 = vunpack.c.h.b16 %v1686
    %v1830 = vunpack.c.l.b16 %v1687
    %v1831 = vunpack.c.h.b16 %v1687
    %v1832 = vunpack.c.l.b16 %v1688
    %v1833 = vunpack.c.h.b16 %v1688
    %v1834 = vunpack.c.l.b16 %v1689
    %v1835 = vunpack.c.h.b16 %v1689
    %v1836 = vunpack.c.l.b16 %v1690
    %v1837 = vunpack.c.h.b16 %v1690
    %v1838 = vunpack.c.l.b16 %v1691
    %v1839 = vunpack.c.h.b16 %v1691
    %v1840 = vunpack.c.l.b16 %v1692
    %v1841 = vunpack.c.h.b16 %v1692
    %v1842 = vunpack.c.l.b16 %v1693
    %v1843 = vunpack.c.h.b16 %v1693
    %v1844 = vunpack.c.l.b16 %v1694
    %v1845 = vunpack.c.h.b16 %v1694
    %v1846 = vunpack.c.l.b16 %v1695
    %v1847 = vunpack.c.h.b16 %v1695
    %v1848 = vunpack.c.l.b16 %v1696
    %v1849 = vunpack.c.h.b16 %v1696
    %v1850 = vunpack.c.l.b16 %v1697
    %v1851 = vunpack.c.h.b16 %v1697
    %v1852 = vunpack.c.l.b16 %v1698
    %v1853 = vunpack.c.h.b16 %v1698
    %v1854 = vunpack.c.l.b16 %v1699
    %v1855 = vunpack.c.h.b16 %v1699
    %v1856 = vunpack.c.l.b16 %v1700
    %v1857 = vunpack.c.h.b16 %v1700
    %v1858 = vunpack.c.l.b16 %v1701
    %v1859 = vunpack.c.h.b16 %v1701
    %v1860 = vunpack.c.l.b16 %v1702
    %v1861 = vunpack.c.h.b16 %v1702
    %v1862 = vunpack.c.l.b16 %v1703
    %v1863 = vunpack.c.h.b16 %v1703
    %v1864 = vunpack.c.l.b16 %v1704
    %v1865 = vunpack.c.h.b16 %v1704
    %v1866 = vunpack.c.l.b16 %v1705
    %v1867 = vunpack.c.h.b16 %v1705
    %v1868 = vunpack.c.l.b16 %v1706
    %v1869 = vunpack.c.h.b16 %v1706
    %v1870 = vunpack.c.l.b16 %v1707
    %v1871 = vunpack.c.h.b16 %v1707
    %v1872 = vunpack.c.l.b16 %v1708
    %v1873 = vunpack.c.h.b16 %v1708
    %v1874 = vunpack.c.l.b16 %v1709
    %v1875 = vunpack.c.h.b16 %v1709
    %v1876 = vunpack.c.l.b16 %v1710
    %v1877 = vunpack.c.h.b16 %v1710
    %v1878 = vunpack.c.l.b16 %v1711
    %v1879 = vunpack.c.h.b16 %v1711
    %v1880 = vunpack.c.l.b16 %v1712
    %v1881 = vunpack.c.h.b16 %v1712
    %v1882 = vunpack.c.l.b16 %v1713
    %v1883 = vunpack.c.h.b16 %v1713
    %v1884 = vunpack.c.l.b16 %v1714
    %v1885 = vunpack.c.h.b16 %v1714
    %v1886 = vunpack.c.l.b16 %v1715
    %v1887 = vunpack.c.h.b16 %v1715
    %v1888 = vunpack.c.l.b16 %v1716
    %v1889 = vunpack.c.h.b16 %v1716
    %v1890 = vunpack.c.l.b16 %v1717
    %v1891 = vunpack.c.h.b16 %v1717
    %v1892 = vunpack.c.l.b16 %v1718
    %v1893 = vunpack.c.h.b16 %v1718
    %v1894 = vunpack.c.l.b16 %v1719
    %v1895 = vunpack.c.h.b16 %v1719
    %v1896 = vunpack.c.l.b16 %v1720
    %v1897 = vunpack.c.h.b16 %v1720
    %v1898 = vunpack.c.l.b16 %v1721
    %v1899 = vunpack.c.h.b16 %v1721
    %v1900 = vunpack.c.l.b16 %v1722
    %v1901 = vunpack.c.h.b16 %v1722
    %v1902 = vunpack.c.l.b16 %v1723
    %v1903 = vunpack.c.h.b16 %v1723
    %v1904 = vunpack.c.l.b16 %v1724
    %v1905 = vunpack.c.h.b16 %v1724
    %v1906 = vunpack.c.l.b16 %v1725
    %v1907 = vunpack.c.h.b16 %v1725
    %v1908 = vunpack.c.l.b16 %v1726
    %v1909 = vunpack.c.h.b16 %v1726
    %v1910 = vunpack.c.l.b16 %v1727
    %v1911 = vunpack.c.h.b16 %v1727
    %v1912 = vunpack.c.l.b16 %v1728
    %v1913 = vunpack.c.h.b16 %v1728
    %v1914 = vunpack.c.l.b16 %v1729
    %v1915 = vunpack.c.h.b16 %v1729
    %v1916 = vunpack.c.l.b16 %v1730
    %v1917 = vunpack.c.h.b16 %v1730
    %v1918 = vunpack.c.l.b16 %v1731
    %v1919 = vunpack.c.h.b16 %v1731
    %v1920 = vunpack.c.l.b16 %v1732
    %v1921 = vunpack.c.h.b16 %v1732
    %v1922 = vunpack.c.l.b16 %v1733
    %v1923 = vunpack.c.h.b16 %v1733
    %v1924 = vunpack.c.l.b16 %v1734
    %v1925 = vunpack.c.h.b16 %v1734
    %v1926 = vunpack.c.l.b16 %v1735
    %v1927 = vunpack.c.h.b16 %v1735
    %v1928 = vunpack.c.l.b16 %v1736
    %v1929 = vunpack.c.h.b16 %v1736
    %v1930 = vunpack.c.l.b16 %v1737
    %v1931 = vunpack.c.h.b16 %v1737
    %v1932 = vunpack.c.l.b16 %v1738
    %v1933 = vunpack.c.h.b16 %v1738
    %v1934 = vunpack.c.l.b16 %v1739
    %v1935 = vunpack.c.h.b16 %v1739
    %v1936 = vunpack.c.l.b16 %v1740
    %v1937 = vunpack.c.h.b16 %v1740
    %v1938 = vunpack.c.l.b16 %v1741
    %v1939 = vunpack.c.h.b16 %v1741
    %v1940 = vpack.c.b16 %v1814, %v1812
    %v1941 = vpack.c.b16 %v1815, %v1813
    %v1942 = vpack.c.b16 %v1818, %v1816
    %v1943 = vpack.c.b16 %v1819, %v1817
    %v1944 = vpack.c.b16 %v1822, %v1820
    %v1945 = vpack.c.b16 %v1823, %v1821
    %v1946 = vpack.c.b16 %v1826, %v1824
    %v1947 = vpack.c.b16 %v1827, %v1825
    %v1948 = vpack.c.b16 %v1830, %v1828
    %v1949 = vpack.c.b16 %v1831, %v1829
    %v1950 = vpack.c.b16 %v1834, %v1832
    %v1951 = vpack.c.b16 %v1835, %v1833
    %v1952 = vpack.c.b16 %v1838, %v1836
    %v1953 = vpack.c.b16 %v1839, %v1837
    %v1954 = vpack.c.b16 %v1842, %v1840
    %v1955 = vpack.c.b16 %v1843, %v1841
    %v1956 = vpack.c.b16 %v1846, %v1844
    %v1957 = vpack.c.b16 %v1847, %v1845
    %v1958 = vpack.c.b16 %v1850, %v1848
    %v1959 = vpack.c.b16 %v1851, %v1849
    %v1960 = vpack.c.b16 %v1854, %v1852
    %v1961 = vpack.c.b16 %v1855, %v1853
    %v1962 = vpack.c.b16 %v1858, %v1856
    %v1963 = vpack.c.b16 %v1859, %v1857
    %v1964 = vpack.c.b16 %v1862, %v1860
    %v1965 = vpack.c.b16 %v1863, %v1861
    %v1966 = vpack.c.b16 %v1866, %v1864
    %v1967 = vpack.c.b16 %v1867, %v1865
    %v1968 = vpack.c.b16 %v1870, %v1868
    %v1969 = vpack.c.b16 %v1871, %v1869
    %v1970 = vpack.c.b16 %v1874, %v1872
    %v1971 = vpack.c.b16 %v1875, %v1873
    %v1972 = vpack.c.b16 %v1878, %v1876
    %v1973 = vpack.c.b16 %v1879, %v1877
    %v1974 = vpack.c.b16 %v1882, %v1880
    %v1975 = vpack.c.b16 %v1883, %v1881
    %v1976 = vpack.c.b16 %v1886, %v1884
    %v1977 = vpack.c.b16 %v1887, %v1885
    %v1978 = vpack.c.b16 %v1890, %v1888
    %v1979 = vpack.c.b16 %v1891, %v1889
    %v1980 = vpack.c.b16 %v1894, %v1892
    %v1981 = vpack.c.b16 %v1895, %v1893
    %v1982 = vpack.c.b16 %v1898, %v1896
    %v1983 = vpack.c.b16 %v1899, %v1897
    %v1984 = vpack.c.b16 %v1902, %v1900
    %v1985 = vpack.c.b16 %v1903, %v1901
    %v1986 = vpack.c.b16 %v1906, %v1904
    %v1987 = vpack.c.b16 %v1907, %v1905
    %v1988 = vpack.c.b16 %v1910, %v1908
    %v1989 = vpack.c.b16 %v1911, %v1909
    %v1990 = vpack.c.b16 %v1914, %v1912
    %v1991 = vpack.c.b16 %v1915, %v1913
    %v1992 = vpack.c.b16 %v1918, %v1916
    %v1993 = vpack.c.b16 %v1919, %v1917
    %v1994 = vpack.c.b16 %v1922, %v1920
    %v1995 = vpack.c.b16 %v1923, %v1921
    %v1996 = vpack.c.b16 %v1926, %v1924
    %v1997 = vpack.c.b16 %v1927, %v1925
    %v1998 = vpack.c.b16 %v1930, %v1928
    %v1999 = vpack.c.b16 %v1931, %v1929
    %v2000 = vpack.c.b16 %v1934, %v1932
    %v2001 = vpack.c.b16 %v1935, %v1933
    %v2002 = vpack.c.b16 %v1938, %v1936
    %v2003 = vpack.c.b16 %v1939, %v1937
    %2068 = vmatpush.bf16.msra.mxu0 %v1954
    %2069 = vmatpush.bf16.msra.mxu0 %v1952
    %2070 = vmatpush.bf16.msra.mxu0 %v1950
    %2071 = vmatpush.bf16.msra.mxu0 %v1948
    %2072 = vmatpush.bf16.msra.mxu0 %v1946
    %2073 = vmatpush.bf16.msra.mxu0 %v1944
    %2074 = vmatpush.bf16.msra.mxu0 %v1942
    %2075 = vmatpush.bf16.msra.mxu0 %v1940
    %2076 = vmatmul.bf16.gmra.mxu0 %v1674
    %v2077 = vpop.f32.mrf.mxu0
    %v2078 = vadd.f32 %v1744, %v2077
    %v2079 = vpop.f32.mrf.mxu0
    %2080 = vdwg.mxu0
    %2081 = vmatpush.bf16.msra.mxu0 %v1970
    %2082 = vmatpush.bf16.msra.mxu0 %v1968
    %2083 = vmatpush.bf16.msra.mxu0 %v1966
    %2084 = vmatpush.bf16.msra.mxu0 %v1964
    %2085 = vmatpush.bf16.msra.mxu0 %v1962
    %2086 = vmatpush.bf16.msra.mxu0 %v1960
    %2087 = vmatpush.bf16.msra.mxu0 %v1958
    %2088 = vmatpush.bf16.msra.mxu0 %v1956
    %2089 = vmatmul.bf16.gmra.mxu0 %v1675
    %v2090 = vpop.f32.mrf.mxu0
    %v2091 = vadd.f32 %v2078, %v2090
    %v2092 = vpop.f32.mrf.mxu0
    %2093 = vdwg.mxu0
    %2094 = vmatpush.bf16.msra.mxu0 %v1986
    %2095 = vmatpush.bf16.msra.mxu0 %v1984
    %2096 = vmatpush.bf16.msra.mxu0 %v1982
    %2097 = vmatpush.bf16.msra.mxu0 %v1980
    %2098 = vmatpush.bf16.msra.mxu0 %v1978
    %2099 = vmatpush.bf16.msra.mxu0 %v1976
    %2100 = vmatpush.bf16.msra.mxu0 %v1974
    %2101 = vmatpush.bf16.msra.mxu0 %v1972
    %2102 = vmatmul.bf16.gmra.mxu0 %v1676
    %v2103 = vpop.f32.mrf.mxu0
    %v2104 = vadd.f32 %v2091, %v2103
    %v2105 = vpop.f32.mrf.mxu0
    %2106 = vdwg.mxu0
    %2107 = vmatpush.bf16.msra.mxu0 %v2002
    %2108 = vmatpush.bf16.msra.mxu0 %v2000
    %2109 = vmatpush.bf16.msra.mxu0 %v1998
    %2110 = vmatpush.bf16.msra.mxu0 %v1996
    %2111 = vmatpush.bf16.msra.mxu0 %v1994
    %2112 = vmatpush.bf16.msra.mxu0 %v1992
    %2113 = vmatpush.bf16.msra.mxu0 %v1990
    %2114 = vmatpush.bf16.msra.mxu0 %v1988
    %2115 = vmatmul.bf16.gmra.mxu0 %v1677
    %v2116 = vpop.f32.mrf.mxu0
    %v2117 = vadd.f32 %v2104, %v2116
    %v2118 = vpop.f32.mrf.mxu0
    %2119 = vdwg.mxu0
    %2120 = vmatpush.bf16.msra.mxu0 %v1955
    %2121 = vmatpush.bf16.msra.mxu0 %v1953
    %2122 = vmatpush.bf16.msra.mxu0 %v1951
    %2123 = vmatpush.bf16.msra.mxu0 %v1949
    %2124 = vmatpush.bf16.msra.mxu0 %v1947
    %2125 = vmatpush.bf16.msra.mxu0 %v1945
    %2126 = vmatpush.bf16.msra.mxu0 %v1943
    %2127 = vmatpush.bf16.msra.mxu0 %v1941
    %2128 = vmatmul.bf16.gmra.mxu0 %v1674
    %v2129 = vpop.f32.mrf.mxu0
    %v2130 = vadd.f32 %v1745, %v2129
    %v2131 = vpop.f32.mrf.mxu0
    %2132 = vdwg.mxu0
    %2133 = vmatpush.bf16.msra.mxu0 %v1971
    %2134 = vmatpush.bf16.msra.mxu0 %v1969
    %2135 = vmatpush.bf16.msra.mxu0 %v1967
    %2136 = vmatpush.bf16.msra.mxu0 %v1965
    %2137 = vmatpush.bf16.msra.mxu0 %v1963
    %2138 = vmatpush.bf16.msra.mxu0 %v1961
    %2139 = vmatpush.bf16.msra.mxu0 %v1959
    %2140 = vmatpush.bf16.msra.mxu0 %v1957
    %2141 = vmatmul.bf16.gmra.mxu0 %v1675
    %v2142 = vpop.f32.mrf.mxu0
    %v2143 = vadd.f32 %v2130, %v2142
    %v2144 = vpop.f32.mrf.mxu0
    %2145 = vdwg.mxu0
    %2146 = vmatpush.bf16.msra.mxu0 %v1987
    %2147 = vmatpush.bf16.msra.mxu0 %v1985
    %2148 = vmatpush.bf16.msra.mxu0 %v1983
    %2149 = vmatpush.bf16.msra.mxu0 %v1981
    %2150 = vmatpush.bf16.msra.mxu0 %v1979
    %2151 = vmatpush.bf16.msra.mxu0 %v1977
    %2152 = vmatpush.bf16.msra.mxu0 %v1975
    %2153 = vmatpush.bf16.msra.mxu0 %v1973
    %2154 = vmatmul.bf16.gmra.mxu0 %v1676
    %v2155 = vpop.f32.mrf.mxu0
    %v2156 = vadd.f32 %v2143, %v2155
    %v2157 = vpop.f32.mrf.mxu0
    %2158 = vdwg.mxu0
    %2159 = vmatpush.bf16.msra.mxu0 %v2003
    %2160 = vmatpush.bf16.msra.mxu0 %v2001
    %2161 = vmatpush.bf16.msra.mxu0 %v1999
    %2162 = vmatpush.bf16.msra.mxu0 %v1997
    %2163 = vmatpush.bf16.msra.mxu0 %v1995
    %2164 = vmatpush.bf16.msra.mxu0 %v1993
    %2165 = vmatpush.bf16.msra.mxu0 %v1991
    %2166 = vmatpush.bf16.msra.mxu0 %v1989
    %2167 = vmatmul.bf16.gmra.mxu0 %v1677
    %v2168 = vpop.f32.mrf.mxu0
    %v2169 = vadd.f32 %v2156, %v2168
    %v2170 = vpop.f32.mrf.mxu0
    %2171 = vdwg.mxu0
    %v2172 = vmax.f32 %v2117, 0.0
    %v2173 = vmax.f32 %v2169, 0.0
    %v2174 = vpack.c.bf16 %v2172, %v2172
    %v2175 = vpack.c.bf16 %v2173, %v2173
    %v2176 = vld [vmem:[#allocation10] sm:$0xf]
    %v2177 = vld [vmem:[#allocation10 + $0x4] sm:$0xf]
    %v2178 = vld [vmem:[#allocation10 + $0x8] sm:$0xf]
    %v2179 = vld [vmem:[#allocation10 + $0xc] sm:$0xf]
    %v2180 = vld [vmem:[#allocation10 + $0x10] sm:$0xf]
    %v2181 = vld [vmem:[#allocation10 + $0x14] sm:$0xf]
    %v2182 = vld [vmem:[#allocation10 + $0x18] sm:$0xf]
    %v2183 = vld [vmem:[#allocation10 + $0x1c] sm:$0xf]
    %v2184 = vld [vmem:[#allocation10 + $0x20] sm:$0xf]
    %v2185 = vld [vmem:[#allocation10 + $0x24] sm:$0xf]
    %v2186 = vld [vmem:[#allocation10 + $0x28] sm:$0xf]
    %v2187 = vld [vmem:[#allocation10 + $0x2c] sm:$0xf]
    %v2188 = vld [vmem:[#allocation10 + $0x30] sm:$0xf]
    %v2189 = vld [vmem:[#allocation10 + $0x34] sm:$0xf]
    %v2190 = vld [vmem:[#allocation10 + $0x38] sm:$0xf]
    %v2191 = vld [vmem:[#allocation10 + $0x3c] sm:$0xf]
    %v2192 = vld [vmem:[#allocation10 + $0x40] sm:$0xf]
    %v2193 = vld [vmem:[#allocation10 + $0x44] sm:$0xf]
    %v2194 = vld [vmem:[#allocation10 + $0x48] sm:$0xf]
    %v2195 = vld [vmem:[#allocation10 + $0x4c] sm:$0xf]
    %v2196 = vld [vmem:[#allocation10 + $0x50] sm:$0xf]
    %v2197 = vld [vmem:[#allocation10 + $0x54] sm:$0xf]
    %v2198 = vld [vmem:[#allocation10 + $0x58] sm:$0xf]
    %v2199 = vld [vmem:[#allocation10 + $0x5c] sm:$0xf]
    %v2200 = vld [vmem:[#allocation10 + $0x60] sm:$0xf]
    %v2201 = vld [vmem:[#allocation10 + $0x64] sm:$0xf]
    %v2202 = vld [vmem:[#allocation10 + $0x68] sm:$0xf]
    %v2203 = vld [vmem:[#allocation10 + $0x6c] sm:$0xf]
    %v2204 = vld [vmem:[#allocation10 + $0x70] sm:$0xf]
    %v2205 = vld [vmem:[#allocation10 + $0x74] sm:$0xf]
    %v2206 = vld [vmem:[#allocation10 + $0x78] sm:$0xf]
    %v2207 = vld [vmem:[#allocation10 + $0x7c] sm:$0xf]
    %v2208 = vld [vmem:[%s6] sm:$0x1]
    %v2210 = vperm.slane %v2208, 0
    %v2244 = vunpack.c.l.b16 %v2176
    %v2245 = vunpack.c.l.b16 %v2177
    %v2246 = vunpack.c.l.b16 %v2178
    %v2247 = vunpack.c.l.b16 %v2179
    %v2248 = vunpack.c.l.b16 %v2180
    %v2249 = vunpack.c.l.b16 %v2181
    %v2250 = vunpack.c.l.b16 %v2182
    %v2251 = vunpack.c.l.b16 %v2183
    %v2252 = vunpack.c.l.b16 %v2184
    %v2253 = vunpack.c.l.b16 %v2185
    %v2254 = vunpack.c.l.b16 %v2186
    %v2255 = vunpack.c.l.b16 %v2187
    %v2256 = vunpack.c.l.b16 %v2188
    %v2257 = vunpack.c.l.b16 %v2189
    %v2258 = vunpack.c.l.b16 %v2190
    %v2259 = vunpack.c.l.b16 %v2191
    %v2260 = vunpack.c.l.b16 %v2192
    %v2261 = vunpack.c.l.b16 %v2193
    %v2262 = vunpack.c.l.b16 %v2194
    %v2263 = vunpack.c.l.b16 %v2195
    %v2264 = vunpack.c.l.b16 %v2196
    %v2265 = vunpack.c.l.b16 %v2197
    %v2266 = vunpack.c.l.b16 %v2198
    %v2267 = vunpack.c.l.b16 %v2199
    %v2268 = vunpack.c.l.b16 %v2200
    %v2269 = vunpack.c.l.b16 %v2201
    %v2270 = vunpack.c.l.b16 %v2202
    %v2271 = vunpack.c.l.b16 %v2203
    %v2272 = vunpack.c.l.b16 %v2204
    %v2273 = vunpack.c.l.b16 %v2205
    %v2274 = vunpack.c.l.b16 %v2206
    %v2275 = vunpack.c.l.b16 %v2207
    %v2276 = vpack.c.b16 %v2245, %v2244
    %v2277 = vpack.c.b16 %v2247, %v2246
    %v2278 = vpack.c.b16 %v2249, %v2248
    %v2279 = vpack.c.b16 %v2251, %v2250
    %v2280 = vpack.c.b16 %v2253, %v2252
    %v2281 = vpack.c.b16 %v2255, %v2254
    %v2282 = vpack.c.b16 %v2257, %v2256
    %v2283 = vpack.c.b16 %v2259, %v2258
    %v2284 = vpack.c.b16 %v2261, %v2260
    %v2285 = vpack.c.b16 %v2263, %v2262
    %v2286 = vpack.c.b16 %v2265, %v2264
    %v2287 = vpack.c.b16 %v2267, %v2266
    %v2288 = vpack.c.b16 %v2269, %v2268
    %v2289 = vpack.c.b16 %v2271, %v2270
    %v2290 = vpack.c.b16 %v2273, %v2272
    %v2291 = vpack.c.b16 %v2275, %v2274
    %2308 = vmatpush.bf16.msra.mxu0 %v2283
    %2309 = vmatpush.bf16.msra.mxu0 %v2282
    %2310 = vmatpush.bf16.msra.mxu0 %v2281
    %2311 = vmatpush.bf16.msra.mxu0 %v2280
    %2312 = vmatpush.bf16.msra.mxu0 %v2279
    %2313 = vmatpush.bf16.msra.mxu0 %v2278
    %2314 = vmatpush.bf16.msra.mxu0 %v2277
    %2315 = vmatpush.bf16.msra.mxu0 %v2276
    %2316 = vmatmul.bf16.gmra.mxu0 %v2174
    %v2317 = vpop.f32.mrf.mxu0
    %v2318 = vadd.f32 %v2210, %v2317
    %v2319 = vpop.f32.mrf.mxu0
    %2320 = vdwg.mxu0
    %2321 = vmatpush.bf16.msra.mxu0 %v2291
    %2322 = vmatpush.bf16.msra.mxu0 %v2290
    %2323 = vmatpush.bf16.msra.mxu0 %v2289
    %2324 = vmatpush.bf16.msra.mxu0 %v2288
    %2325 = vmatpush.bf16.msra.mxu0 %v2287
    %2326 = vmatpush.bf16.msra.mxu0 %v2286
    %2327 = vmatpush.bf16.msra.mxu0 %v2285
    %2328 = vmatpush.bf16.msra.mxu0 %v2284
    %2329 = vmatmul.bf16.gmra.mxu0 %v2175
    %v2330 = vpop.f32.mrf.mxu0
    %v2331 = vadd.f32 %v2318, %v2330
    %v2332 = vpop.f32.mrf.mxu0
    %2333 = vdwg.mxu0
    %v2334 = vmax.f32 %v2331, 0.0
    %v2335 = vlaneseq
    %v2336 = vand.u32 %v2335, 127
    %vm2337 = vcmp.lt.s32.totalorder %v2336, 10
    %v2338 = vsel %vm2337, %v2334, -inf
    %2339 = vmax.xlane.f32.xlu0 %v2338
    %v2340 = vpop.xlane.xlu0 %2339
    %v2341 = vsub.f32 %v2338, %v2340
    %v2342 = vmul.f32 %v2341, 1.442695
    %v2343 = vpow.pop %v2342
    %2344 = vadd.xlane.f32.xlu0 %v2343
    %v2345 = vpop.xlane.xlu0 %2344
    %v2346 = vlog2.pop %v2345
    %v2347 = vmul.f32 %v2346, 0.6931472
    %v2348 = vsub.f32 %v2341, %v2347
    %2349 = vst [vmem:[#allocation11] sm:$0xff] %v2348
    // Predicated region
    $region50: #{tpu_custom_call.1} parent=1 // pred_check
      _
    $region51: #{tpu_custom_call.1} parent=1 // pred_check_branch
      %2351 = sbr.rel (0) target = $region53
    $region52: #{tpu_custom_call.1} parent=1 // pred_region
      %2353 = vsyncadd [#allocation4], 0
      %s2355 = sshll.u32 [#allocation11], 4
      %s2356 = int_to_ptr.vmem [resolvable:$true] %s2355
      %s2357 = sshll.u32 %s7, 4
      %s2358 = int_to_ptr.hbm [resolvable:$true] %s2357
      %2360 = dma.vmem_to_hbm [thread:$0]  %s2356, 128, %s2358, [#allocation4]
    $region53: #{tpu_custom_call.1} parent=1 // pred_fallthru
      _
    // Predicated region
    $region54: #{tpu_custom_call.1} parent=1 // pred_check
      _
    $region55: #{tpu_custom_call.1} parent=1 // pred_check_branch
      %2362 = sbr.rel (0) target = $region57
    $region56: #{tpu_custom_call.1} parent=1 // pred_region
      %2364 = dma.done [#allocation4], 128
    $region57: #{tpu_custom_call.1} parent=1 // pred_fallthru
      _
    %2365 = vsyncpa [#allocation3], 1
    %2366 = vsyncpa [#allocation6], 1
    %2367 = vsyncpa [#allocation9], 1
    %2368 = vsyncpa [#allocation4], 1

</llo_original>
